<compile_context>
chip_gen: v5e
topology: v5e:2x2
jax: 0.10.0
libtpu: 0.0.40
codegen_flags: <defaults>
</compile_context>

<pallas_src>
import functools

import jax
import jax.numpy as jnp
from jax import lax
from jax.experimental import pallas as pl
from jax.experimental.pallas import tpu as pltpu


def _round_up(x, m):
    return (x + m - 1) // m * m


def _conv_module_kernel(x_ref, halo_ref, vp_ref, dw_ref, scal_ref, out_ref,
                        y_ref, *, ksize, pad_l, hpad, t_tile, num_tiles,
                        seq_len, mask_main, has_right):
    """One (batch, time-tile) grid step.

    x_ref   : (1, tT, D)   main rows of the tile   (global t0 .. t0+tT)
    halo_ref: (1, hs, D)   rows [0:hpad]   = left halo  (global t0-hpad .. t0)
                           rows [hpad:2h]  = right halo (non-causal only)
    vp_ref  : (8, D)       rows = [a_w, a_b, g_w, g_b, dw_bias, 0, 0, 0]
    dw_ref  : (K, D)       depthwise conv weights (tap-major)
    scal_ref: SMEM (2,)    [pw2_w, pw2_b]
    y_ref   : VMEM scratch (tT + hs, D) holding the GLU output window.
    """
    t = pl.program_id(1)
    base = t * t_tile                      # global time index of main row 0

    a_w = vp_ref[0:1, :]
    a_b = vp_ref[1:2, :]
    g_w = vp_ref[2:3, :]
    g_b = vp_ref[3:4, :]
    dw_b = vp_ref[4:5, :]

    def ln_glu(xp, g_off, need_mask):
        xp = xp.astype(jnp.float32)
        mean = jnp.mean(xp, axis=-1, keepdims=True)
        xc = xp - mean
        var = jnp.mean(xc * xc, axis=-1, keepdims=True)
        xhat = xc * lax.rsqrt(var + 1e-5)            # nn.LayerNorm eps
        a = xhat * a_w + a_b                         # pw_conv_1 folded into LN
        g = xhat * g_w + g_b
        y = a * jax.nn.sigmoid(g)                    # GLU
        if need_mask:
            # zero rows outside the valid sequence [0, T): padded/zero rows
            # still produce nonzero values after LN+affine, so this mask is
            # required for edge-correctness of the depthwise taps.
            rows = lax.broadcasted_iota(jnp.int32, (xp.shape[0], 1), 0)
            gidx = rows + g_off
            y = jnp.where((gidx >= 0) & (gidx < seq_len), y, 0.0)
        return y.astype(y_ref.dtype)

    halo = halo_ref[0]
    # Window row w  <->  global time  base - hpad + w.
    y_ref[0:hpad, :] = ln_glu(halo[0:hpad, :], base - hpad, True)
    y_ref[hpad:hpad + t_tile, :] = ln_glu(x_ref[0], base, False)
    if mask_main:
        # Only the last tile can hang past T (and it only matters when the
        # conv has right-looking taps); interior tiles skip the mask math.
        @pl.when(t == num_tiles - 1)
        def _():
            rows = lax.broadcasted_iota(jnp.int32, (t_tile, 1), 0)
            valid = (rows + base) < seq_len
            cur = y_ref[hpad:hpad + t_tile, :]
            y_ref[hpad:hpad + t_tile, :] = jnp.where(valid, cur,
                                                     jnp.zeros_like(cur))
    if has_right:
        y_ref[hpad + t_tile:, :] = ln_glu(halo[hpad:2 * hpad, :],
                                          base + t_tile, True)

    # Depthwise conv over time: out[j] = sum_k w[k] * y[j - pad_l + k] + b.
    # Tap k lives at static window rows [d0 + k, d0 + k + tT).
    # (Possible v7x follow-up after bundle inspection: aligned 8-row band
    #  loads + pltpu.roll to move the sublane shifts onto the XLU slot.)
    d0 = hpad - pad_l
    acc = y_ref[pl.ds(d0, t_tile), :] * dw_ref[0:1, :]
    for k in range(1, ksize):
        acc = acc + y_ref[pl.ds(d0 + k, t_tile), :] * dw_ref[k:k + 1, :]

    # ReLU, then pw_conv_2 (scalar 1x1 conv).  Dropout == identity (eval).
    z = jnp.maximum(acc + dw_b, 0.0)
    out_ref[0] = (z * scal_ref[0] + scal_ref[1]).astype(out_ref.dtype)


@functools.partial(
    jax.jit,
    static_argnames=("kernel_size", "causal", "time_tile", "glu_scratch_dtype"))
def conv_module_forward(x, ln_w, ln_b, pw1_w, pw1_b, dw_w, dw_b, pw2_w, pw2_b,
                        kernel_size, causal=False, time_tile=512,
                        glu_scratch_dtype=jnp.float32):
    """x: (B, T, D).  dw_w: (K, D) == PyTorch conv weight[d, 0, k] transposed.

    I/O stays in x.dtype (pass bf16 x for bf16 I/O); compute is f32.
    glu_scratch_dtype=jnp.bfloat16 halves the VMEM re-read traffic of the
    depthwise taps (recommended on v6e/v7x; keep f32 on v5e).
    """
    B, T, D = x.shape
    K = kernel_size
    assert D % 128 == 0, "pad channels to a multiple of 128 for lane-dense I/O"
    if causal:
        pad_l, pad_r = K - 1, 0
    else:
        assert K % 2 == 1, "non-causal path assumes odd kernel_size"
        pad_l = pad_r = (K - 1) // 2

    # Tile sizes (all multiples of 8 sublanes).
    hpad = _round_up(max(K - 1, 1), 8)                   # halo rows per side
    tT = max(8, _round_up(min(time_tile, _round_up(T, 8)), 8))
    tT = max(tT, hpad)
    nT = -(-T // tT)                                     # cdiv
    Tm = nT * tT
    has_right = pad_r > 0
    hs = 2 * hpad if has_right else hpad                 # halo rows per tile
    W = tT + hs                                          # GLU window rows

    f32 = jnp.float32
    # Fold pw_conv_1 (Conv2d(1,2,1) == per-element affine) into LN affine.
    a_w = (ln_w * pw1_w[0]).astype(f32)
    a_b = (ln_b * pw1_w[0] + pw1_b[0]).astype(f32)
    g_w = (ln_w * pw1_w[1]).astype(f32)
    g_b = (ln_b * pw1_w[1] + pw1_b[1]).astype(f32)
    vparams = (jnp.zeros((8, D), f32)
               .at[0].set(a_w).at[1].set(a_b)
               .at[2].set(g_w).at[3].set(g_b)
               .at[4].set(dw_b.astype(f32)))
    scal = jnp.stack([jnp.asarray(pw2_w), jnp.asarray(pw2_b)]).astype(f32)

    # Main input is x itself; right-pad only when the last tile is partial.
    x_main = x if Tm == T else jnp.pad(x, ((0, 0), (0, Tm - T), (0, 0)))

    # One small merged halo side-array (~2*hpad/tT of x of extra HBM reads),
    # built from thin strided slices of x_main.  Tile 0's left halo and the
    # last tile's right halo are zeros (masked out inside the kernel).
    zero_h = jnp.zeros((B, 1, hpad, D), x.dtype)
    if nT > 1:
        tiles = x_main.reshape(B, nT, tT, D)
        hl = jnp.concatenate([zero_h, tiles[:, :-1, tT - hpad:, :]], axis=1)
        hr = (jnp.concatenate([tiles[:, 1:, :hpad, :], zero_h], axis=1)
              if has_right else None)
    else:
        hl, hr = zero_h, (zero_h if has_right else None)
    halo = jnp.concatenate([hl, hr], axis=2) if has_right else hl
    halo = halo.reshape(B, nT * hs, D)

    # Main rows only need masking when the last tile hangs past T and the
    # conv has right-looking taps (non-causal).  Causal garbage rows >= T in
    # the window are never read by a valid output row (taps look back only)
    # and the wrapper slices out[:, :T, :].
    mask_main = (Tm != T) and has_right

    kernel = functools.partial(
        _conv_module_kernel, ksize=K, pad_l=pad_l, hpad=hpad, t_tile=tT,
        num_tiles=nT, seq_len=T, mask_main=mask_main, has_right=has_right)

    # Per-step working set (double-buffered I/O + scratch + params); cap the
    # scoped-VMEM limit at 48 MiB so big-D tiles stay safe on v7x (64 MiB).
    io_item = jnp.dtype(x.dtype).itemsize
    step_bytes = (2 * (tT * D + hs * D + tT * D) * io_item
                  + W * D * jnp.dtype(glu_scratch_dtype).itemsize
                  + (8 + K) * D * 4)
    vmem_limit = int(min(max(2 * step_bytes, 32 * 1024 * 1024),
                         48 * 1024 * 1024))

    out = pl.pallas_call(
        kernel,
        out_shape=jax.ShapeDtypeStruct((B, Tm, D), x.dtype),
        grid=(B, nT),
        in_specs=[
            pl.BlockSpec((1, tT, D), lambda b, t: (b, t, 0)),      # main tile
            pl.BlockSpec((1, hs, D), lambda b, t: (b, t, 0)),      # merged halo
            pl.BlockSpec((8, D), lambda b, t: (0, 0)),             # LN/GLU params
            pl.BlockSpec((K, D), lambda b, t: (0, 0)),             # dw weights
            pl.BlockSpec(memory_space=pltpu.MemorySpace.SMEM),     # pw2 scalars
        ],
        out_specs=pl.BlockSpec((1, tT, D), lambda b, t: (b, t, 0)),
        scratch_shapes=[pltpu.VMEM((W, D), glu_scratch_dtype)],
        compiler_params=pltpu.CompilerParams(
            dimension_semantics=("parallel", "parallel"),
            vmem_limit_bytes=vmem_limit),
    )(x_main, halo, vparams, dw_w.astype(f32), scal)

    return out[:, :T, :] if Tm != T else out


def reference_forward(x, ln_w, ln_b, pw1_w, pw1_b, dw_w, dw_b, pw2_w, pw2_b,
                      kernel_size, causal=False):
    """Pure-JAX reference mirroring the PyTorch forward."""
    K = kernel_size
    mean = jnp.mean(x, axis=-1, keepdims=True)
    var = jnp.mean((x - mean) ** 2, axis=-1, keepdims=True)
    xn = (x - mean) / jnp.sqrt(var + 1e-5) * ln_w + ln_b
    a = xn * pw1_w[0] + pw1_b[0]
    g = xn * pw1_w[1] + pw1_b[1]
    y = a * jax.nn.sigmoid(g)                            # (B, T, D)
    if causal:
        pad_l, pad_r = K - 1, 0
    else:
        pad_l = pad_r = (K - 1) // 2
    T = x.shape[1]
    y_pad = jnp.pad(y, ((0, 0), (pad_l, pad_r), (0, 0)))
    out = sum(y_pad[:, k:k + T, :] * dw_w[k][None, None, :] for k in range(K))
    out = out + dw_b
    out = jnp.maximum(out, 0.0)
    return out * pw2_w + pw2_b


if __name__ == "__main__":
    B, D = 2, 128                          # lane-dense D (multiple of 128)
    base_key = jax.random.PRNGKey(0)

    # (kernel_size, causal, T, time_tile, io dtype, tolerance): exercises
    # multi-tile halos, a partial last tile with last-tile-only masking, the
    # causal fast path (no right halo), and bf16 I/O (f32 compute inside).
    configs = [
        (7, False, 200, 64, jnp.float32, 1e-4),
        (5, True, 96, 32, jnp.float32, 1e-4),
        (7, False, 72, 32, jnp.bfloat16, 1e-1),
    ]

    for idx, (K, causal, T, tT, io_dt, tol) in enumerate(configs):
        ks = jax.random.split(jax.random.fold_in(base_key, idx), 9)
        x = jax.random.normal(ks[0], (B, T, D), jnp.float32).astype(io_dt)

        # Synthetic parameters with shapes implied by the module's __init__.
        ln_w = 1.0 + 0.1 * jax.random.normal(ks[1], (D,), jnp.float32)
        ln_b = 0.1 * jax.random.normal(ks[2], (D,), jnp.float32)
        pw1_w = jax.random.normal(ks[3], (2,), jnp.float32)        # Conv2d(1,2,1)
        pw1_b = 0.1 * jax.random.normal(ks[4], (2,), jnp.float32)
        dw_w = jax.random.normal(ks[5], (K, D), jnp.float32) / K   # Conv1d(D,D,K,groups=D)
        dw_b = 0.1 * jax.random.normal(ks[6], (D,), jnp.float32)
        pw2_w = jax.random.normal(ks[7], (), jnp.float32)          # Conv2d(1,1,1)
        pw2_b = 0.1 * jax.random.normal(ks[8], (), jnp.float32)

        out = conv_module_forward(x, ln_w, ln_b, pw1_w, pw1_b, dw_w, dw_b,
                                  pw2_w, pw2_b, kernel_size=K, causal=causal,
                                  time_tile=tT)
        out = jax.block_until_ready(out)

        ref = jax.block_until_ready(
            reference_forward(x.astype(jnp.float32), ln_w, ln_b, pw1_w, pw1_b,
                              dw_w, dw_b, pw2_w, pw2_b, K, causal=causal))

        assert out.shape == (B, T, D) and out.dtype == io_dt
        err = float(jnp.max(jnp.abs(out.astype(jnp.float32) - ref)))
        assert err < tol, f"config {idx}: max abs err = {err}"

    print("KERNEL_OK")
</pallas_src>

<mosaic_0001>
module attributes {stable_mosaic.version = 11 : i64} {
  func.func @_conv_module_kernel(%arg0: i32, %arg1: i32, %arg2: memref<1x64x128xf32, #tpu.memory_space<vmem>>, %arg3: memref<1x16x128xf32, #tpu.memory_space<vmem>>, %arg4: memref<8x128xf32, #tpu.memory_space<vmem>>, %arg5: memref<7x128xf32, #tpu.memory_space<vmem>>, %arg6: memref<2xf32, #tpu.memory_space<smem>>, %arg7: memref<1x64x128xf32, #tpu.memory_space<vmem>>, %arg8: memref<80x128xf32, #tpu.memory_space<vmem>>) attributes {dimension_semantics = [#tpu.dimension_semantics<parallel>, #tpu.dimension_semantics<parallel>], iteration_bounds = array<i64: 2, 4>, scalar_prefetch = 0 : i64, scratch_operands = 1 : i64, tpu.core_type = #tpu.core_type<tc>, window_params = [{transform_indices = @transform_0, window_bounds = array<i64: 1, 64, 128>}, {transform_indices = @transform_1, window_bounds = array<i64: 1, 16, 128>}, {pipeline_mode = #tpu.pipeline_mode<synchronous>, transform_indices = @transform_2, window_bounds = array<i64: 8, 128>}, {pipeline_mode = #tpu.pipeline_mode<synchronous>, transform_indices = @transform_3, window_bounds = array<i64: 7, 128>}, {transform_indices = @transform_4, window_bounds = array<i64: 2>}, {transform_indices = @transform_5, window_bounds = array<i64: 1, 64, 128>}]} {
    %c64_i32 = arith.constant 64 : i32
    %0 = arith.muli %arg1, %c64_i32 : i32
    %c0 = arith.constant 0 : index
    %c0_0 = arith.constant 0 : index
    %1 = vector.load %arg4[%c0, %c0_0] : memref<8x128xf32, #tpu.memory_space<vmem>>, vector<1x128xf32>
    %c1 = arith.constant 1 : index
    %c0_1 = arith.constant 0 : index
    %2 = vector.load %arg4[%c1, %c0_1] : memref<8x128xf32, #tpu.memory_space<vmem>>, vector<1x128xf32>
    %c2 = arith.constant 2 : index
    %c0_2 = arith.constant 0 : index
    %3 = vector.load %arg4[%c2, %c0_2] : memref<8x128xf32, #tpu.memory_space<vmem>>, vector<1x128xf32>
    %c3 = arith.constant 3 : index
    %c0_3 = arith.constant 0 : index
    %4 = vector.load %arg4[%c3, %c0_3] : memref<8x128xf32, #tpu.memory_space<vmem>>, vector<1x128xf32>
    %c4 = arith.constant 4 : index
    %c0_4 = arith.constant 0 : index
    %5 = vector.load %arg4[%c4, %c0_4] : memref<8x128xf32, #tpu.memory_space<vmem>>, vector<1x128xf32>
    %c0_5 = arith.constant 0 : index
    %c0_6 = arith.constant 0 : index
    %c0_7 = arith.constant 0 : index
    %6 = vector.load %arg3[%c0_5, %c0_6, %c0_7] : memref<1x16x128xf32, #tpu.memory_space<vmem>>, vector<1x16x128xf32>
    %7 = vector.shape_cast %6 : vector<1x16x128xf32> to vector<16x128xf32>
    %8 = vector.extract_strided_slice %7 {offsets = [0, 0], sizes = [8, 128], strides = [1, 1]} : vector<16x128xf32> to vector<8x128xf32>
    %c8_i32 = arith.constant 8 : i32
    %9 = arith.subi %0, %c8_i32 : i32
    %cst = arith.constant dense<0.000000e+00> : vector<8xf32>
    %10 = vector.multi_reduction <add>, %8, %cst [1] : vector<8x128xf32> to vector<8xf32>
    %11 = vector.shape_cast %10 : vector<8xf32> to vector<8x1xf32>
    %cst_8 = arith.constant 1.280000e+02 : f32
    %12 = vector.broadcast %cst_8 : f32 to vector<8x1xf32>
    %13 = arith.divf %11, %12 : vector<8x1xf32>
    %14 = vector.broadcast %13 : vector<8x1xf32> to vector<8x128xf32>
    %15 = arith.subf %8, %14 : vector<8x128xf32>
    %16 = arith.mulf %15, %15 : vector<8x128xf32>
    %cst_9 = arith.constant dense<0.000000e+00> : vector<8xf32>
    %17 = vector.multi_reduction <add>, %16, %cst_9 [1] : vector<8x128xf32> to vector<8xf32>
    %18 = vector.shape_cast %17 : vector<8xf32> to vector<8x1xf32>
    %cst_10 = arith.constant 1.280000e+02 : f32
    %19 = vector.broadcast %cst_10 : f32 to vector<8x1xf32>
    %20 = arith.divf %18, %19 : vector<8x1xf32>
    %cst_11 = arith.constant 9.99999974E-6 : f32
    %21 = vector.broadcast %cst_11 : f32 to vector<8x1xf32>
    %22 = arith.addf %20, %21 : vector<8x1xf32>
    %23 = math.rsqrt %22 : vector<8x1xf32>
    %24 = vector.broadcast %23 : vector<8x1xf32> to vector<8x128xf32>
    %25 = arith.mulf %15, %24 : vector<8x128xf32>
    %26 = vector.broadcast %1 : vector<1x128xf32> to vector<8x128xf32>
    %27 = arith.mulf %25, %26 : vector<8x128xf32>
    %28 = vector.broadcast %2 : vector<1x128xf32> to vector<8x128xf32>
    %29 = arith.addf %27, %28 : vector<8x128xf32>
    %30 = vector.broadcast %3 : vector<1x128xf32> to vector<8x128xf32>
    %31 = arith.mulf %25, %30 : vector<8x128xf32>
    %32 = vector.broadcast %4 : vector<1x128xf32> to vector<8x128xf32>
    %33 = arith.addf %31, %32 : vector<8x128xf32>
    %34 = arith.negf %33 : vector<8x128xf32>
    %35 = math.exp %34 : vector<8x128xf32>
    %cst_12 = arith.constant 1.000000e+00 : f32
    %36 = vector.broadcast %cst_12 : f32 to vector<8x128xf32>
    %37 = arith.addf %36, %35 : vector<8x128xf32>
    %38 = arith.divf %36, %37 : vector<8x128xf32>
    %39 = arith.mulf %29, %38 : vector<8x128xf32>
    %40 = tpu.iota {dimensions = array<i32: 0>} : vector<8x1xi32>
    %41 = vector.broadcast %9 : i32 to vector<8x1xi32>
    %42 = arith.addi %40, %41 : vector<8x1xi32>
    %c0_i32 = arith.constant 0 : i32
    %43 = vector.broadcast %c0_i32 : i32 to vector<8x1xi32>
    %44 = arith.cmpi sge, %42, %43 : vector<8x1xi32>
    %c200_i32 = arith.constant 200 : i32
    %45 = vector.broadcast %c200_i32 : i32 to vector<8x1xi32>
    %46 = arith.cmpi slt, %42, %45 : vector<8x1xi32>
    %47 = arith.andi %44, %46 : vector<8x1xi1>
    %cst_13 = arith.constant 0.000000e+00 : f32
    %48 = vector.shape_cast %47 : vector<8x1xi1> to vector<8x1xi1>
    %49 = vector.broadcast %48 : vector<8x1xi1> to vector<8x128xi1>
    %50 = vector.broadcast %cst_13 : f32 to vector<8x128xf32>
    %51 = arith.select %49, %39, %50 : vector<8x128xi1>, vector<8x128xf32>
    %c0_14 = arith.constant 0 : index
    %c0_15 = arith.constant 0 : index
    %52 = vector.load %arg8[%c0_14, %c0_15] : memref<80x128xf32, #tpu.memory_space<vmem>>, vector<8x128xf32>
    tpu.vector_store %arg8[%c0_14, %c0_15], %51 {strides = array<i32>} : memref<80x128xf32, #tpu.memory_space<vmem>>, vector<8x128xf32>,
    %c0_16 = arith.constant 0 : index
    %c0_17 = arith.constant 0 : index
    %c0_18 = arith.constant 0 : index
    %53 = vector.load %arg2[%c0_16, %c0_17, %c0_18] : memref<1x64x128xf32, #tpu.memory_space<vmem>>, vector<1x64x128xf32>
    %54 = vector.shape_cast %53 : vector<1x64x128xf32> to vector<64x128xf32>
    %cst_19 = arith.constant dense<0.000000e+00> : vector<64xf32>
    %55 = vector.multi_reduction <add>, %54, %cst_19 [1] : vector<64x128xf32> to vector<64xf32>
    %56 = vector.shape_cast %55 : vector<64xf32> to vector<64x1xf32>
    %cst_20 = arith.constant 1.280000e+02 : f32
    %57 = vector.broadcast %cst_20 : f32 to vector<64x1xf32>
    %58 = arith.divf %56, %57 : vector<64x1xf32>
    %59 = vector.broadcast %58 : vector<64x1xf32> to vector<64x128xf32>
    %60 = arith.subf %54, %59 : vector<64x128xf32>
    %61 = arith.mulf %60, %60 : vector<64x128xf32>
    %cst_21 = arith.constant dense<0.000000e+00> : vector<64xf32>
    %62 = vector.multi_reduction <add>, %61, %cst_21 [1] : vector<64x128xf32> to vector<64xf32>
    %63 = vector.shape_cast %62 : vector<64xf32> to vector<64x1xf32>
    %cst_22 = arith.constant 1.280000e+02 : f32
    %64 = vector.broadcast %cst_22 : f32 to vector<64x1xf32>
    %65 = arith.divf %63, %64 : vector<64x1xf32>
    %cst_23 = arith.constant 9.99999974E-6 : f32
    %66 = vector.broadcast %cst_23 : f32 to vector<64x1xf32>
    %67 = arith.addf %65, %66 : vector<64x1xf32>
    %68 = math.rsqrt %67 : vector<64x1xf32>
    %69 = vector.broadcast %68 : vector<64x1xf32> to vector<64x128xf32>
    %70 = arith.mulf %60, %69 : vector<64x128xf32>
    %71 = vector.broadcast %1 : vector<1x128xf32> to vector<64x128xf32>
    %72 = arith.mulf %70, %71 : vector<64x128xf32>
    %73 = vector.broadcast %2 : vector<1x128xf32> to vector<64x128xf32>
    %74 = arith.addf %72, %73 : vector<64x128xf32>
    %75 = vector.broadcast %3 : vector<1x128xf32> to vector<64x128xf32>
    %76 = arith.mulf %70, %75 : vector<64x128xf32>
    %77 = vector.broadcast %4 : vector<1x128xf32> to vector<64x128xf32>
    %78 = arith.addf %76, %77 : vector<64x128xf32>
    %79 = arith.negf %78 : vector<64x128xf32>
    %80 = math.exp %79 : vector<64x128xf32>
    %cst_24 = arith.constant 1.000000e+00 : f32
    %81 = vector.broadcast %cst_24 : f32 to vector<64x128xf32>
    %82 = arith.addf %81, %80 : vector<64x128xf32>
    %83 = arith.divf %81, %82 : vector<64x128xf32>
    %84 = arith.mulf %74, %83 : vector<64x128xf32>
    %c8 = arith.constant 8 : index
    %c0_25 = arith.constant 0 : index
    %85 = vector.load %arg8[%c8, %c0_25] : memref<80x128xf32, #tpu.memory_space<vmem>>, vector<64x128xf32>
    tpu.vector_store %arg8[%c8, %c0_25], %84 {strides = array<i32>} : memref<80x128xf32, #tpu.memory_space<vmem>>, vector<64x128xf32>,
    %c3_i32 = arith.constant 3 : i32
    %86 = arith.cmpi eq, %arg1, %c3_i32 : i32
    %87 = arith.extui %86 : i1 to i32
    %c0_i32_26 = arith.constant 0 : i32
    %88 = arith.cmpi ne, %87, %c0_i32_26 : i32
    scf.if %88 {
      %181 = tpu.iota {dimensions = array<i32: 0>} : vector<64x1xi32>
      %182 = vector.broadcast %0 : i32 to vector<64x1xi32>
      %183 = arith.addi %181, %182 : vector<64x1xi32>
      %c200_i32_66 = arith.constant 200 : i32
      %184 = vector.broadcast %c200_i32_66 : i32 to vector<64x1xi32>
      %185 = arith.cmpi slt, %183, %184 : vector<64x1xi32>
      %c8_67 = arith.constant 8 : index
      %c0_68 = arith.constant 0 : index
      %186 = vector.load %arg8[%c8_67, %c0_68] : memref<80x128xf32, #tpu.memory_space<vmem>>, vector<64x128xf32>
      %cst_69 = arith.constant 0.000000e+00 : f32
      %187 = vector.broadcast %cst_69 : f32 to vector<64x128xf32>
      %188 = vector.shape_cast %185 : vector<64x1xi1> to vector<64x1xi1>
      %189 = vector.broadcast %188 : vector<64x1xi1> to vector<64x128xi1>
      %190 = arith.select %189, %186, %187 : vector<64x128xi1>, vector<64x128xf32>
      %c8_70 = arith.constant 8 : index
      %c0_71 = arith.constant 0 : index
      %191 = vector.load %arg8[%c8_70, %c0_71] : memref<80x128xf32, #tpu.memory_space<vmem>>, vector<64x128xf32>
      tpu.vector_store %arg8[%c8_70, %c0_71], %190 {strides = array<i32>} : memref<80x128xf32, #tpu.memory_space<vmem>>, vector<64x128xf32>,
    } else {
    }
    %89 = vector.extract_strided_slice %7 {offsets = [8, 0], sizes = [8, 128], strides = [1, 1]} : vector<16x128xf32> to vector<8x128xf32>
    %c64_i32_27 = arith.constant 64 : i32
    %90 = arith.addi %0, %c64_i32_27 : i32
    %cst_28 = arith.constant dense<0.000000e+00> : vector<8xf32>
    %91 = vector.multi_reduction <add>, %89, %cst_28 [1] : vector<8x128xf32> to vector<8xf32>
    %92 = vector.shape_cast %91 : vector<8xf32> to vector<8x1xf32>
    %cst_29 = arith.constant 1.280000e+02 : f32
    %93 = vector.broadcast %cst_29 : f32 to vector<8x1xf32>
    %94 = arith.divf %92, %93 : vector<8x1xf32>
    %95 = vector.broadcast %94 : vector<8x1xf32> to vector<8x128xf32>
    %96 = arith.subf %89, %95 : vector<8x128xf32>
    %97 = arith.mulf %96, %96 : vector<8x128xf32>
    %cst_30 = arith.constant dense<0.000000e+00> : vector<8xf32>
    %98 = vector.multi_reduction <add>, %97, %cst_30 [1] : vector<8x128xf32> to vector<8xf32>
    %99 = vector.shape_cast %98 : vector<8xf32> to vector<8x1xf32>
    %cst_31 = arith.constant 1.280000e+02 : f32
    %100 = vector.broadcast %cst_31 : f32 to vector<8x1xf32>
    %101 = arith.divf %99, %100 : vector<8x1xf32>
    %cst_32 = arith.constant 9.99999974E-6 : f32
    %102 = vector.broadcast %cst_32 : f32 to vector<8x1xf32>
    %103 = arith.addf %101, %102 : vector<8x1xf32>
    %104 = math.rsqrt %103 : vector<8x1xf32>
    %105 = vector.broadcast %104 : vector<8x1xf32> to vector<8x128xf32>
    %106 = arith.mulf %96, %105 : vector<8x128xf32>
    %107 = vector.broadcast %1 : vector<1x128xf32> to vector<8x128xf32>
    %108 = arith.mulf %106, %107 : vector<8x128xf32>
    %109 = vector.broadcast %2 : vector<1x128xf32> to vector<8x128xf32>
    %110 = arith.addf %108, %109 : vector<8x128xf32>
    %111 = vector.broadcast %3 : vector<1x128xf32> to vector<8x128xf32>
    %112 = arith.mulf %106, %111 : vector<8x128xf32>
    %113 = vector.broadcast %4 : vector<1x128xf32> to vector<8x128xf32>
    %114 = arith.addf %112, %113 : vector<8x128xf32>
    %115 = arith.negf %114 : vector<8x128xf32>
    %116 = math.exp %115 : vector<8x128xf32>
    %cst_33 = arith.constant 1.000000e+00 : f32
    %117 = vector.broadcast %cst_33 : f32 to vector<8x128xf32>
    %118 = arith.addf %117, %116 : vector<8x128xf32>
    %119 = arith.divf %117, %118 : vector<8x128xf32>
    %120 = arith.mulf %110, %119 : vector<8x128xf32>
    %121 = tpu.iota {dimensions = array<i32: 0>} : vector<8x1xi32>
    %122 = vector.broadcast %90 : i32 to vector<8x1xi32>
    %123 = arith.addi %121, %122 : vector<8x1xi32>
    %c0_i32_34 = arith.constant 0 : i32
    %124 = vector.broadcast %c0_i32_34 : i32 to vector<8x1xi32>
    %125 = arith.cmpi sge, %123, %124 : vector<8x1xi32>
    %c200_i32_35 = arith.constant 200 : i32
    %126 = vector.broadcast %c200_i32_35 : i32 to vector<8x1xi32>
    %127 = arith.cmpi slt, %123, %126 : vector<8x1xi32>
    %128 = arith.andi %125, %127 : vector<8x1xi1>
    %cst_36 = arith.constant 0.000000e+00 : f32
    %129 = vector.shape_cast %128 : vector<8x1xi1> to vector<8x1xi1>
    %130 = vector.broadcast %129 : vector<8x1xi1> to vector<8x128xi1>
    %131 = vector.broadcast %cst_36 : f32 to vector<8x128xf32>
    %132 = arith.select %130, %120, %131 : vector<8x128xi1>, vector<8x128xf32>
    %c72 = arith.constant 72 : index
    %c0_37 = arith.constant 0 : index
    %133 = vector.load %arg8[%c72, %c0_37] : memref<80x128xf32, #tpu.memory_space<vmem>>, vector<8x128xf32>
    tpu.vector_store %arg8[%c72, %c0_37], %132 {strides = array<i32>} : memref<80x128xf32, #tpu.memory_space<vmem>>, vector<8x128xf32>,
    %c5 = arith.constant 5 : index
    %c0_38 = arith.constant 0 : index
    %134 = vector.load %arg8[%c5, %c0_38] : memref<80x128xf32, #tpu.memory_space<vmem>>, vector<64x128xf32>
    %c0_39 = arith.constant 0 : index
    %c0_40 = arith.constant 0 : index
    %135 = vector.load %arg5[%c0_39, %c0_40] : memref<7x128xf32, #tpu.memory_space<vmem>>, vector<1x128xf32>
    %136 = vector.broadcast %135 : vector<1x128xf32> to vector<64x128xf32>
    %137 = arith.mulf %134, %136 : vector<64x128xf32>
    %c6 = arith.constant 6 : index
    %c0_41 = arith.constant 0 : index
    %138 = vector.load %arg8[%c6, %c0_41] : memref<80x128xf32, #tpu.memory_space<vmem>>, vector<64x128xf32>
    %c1_42 = arith.constant 1 : index
    %c0_43 = arith.constant 0 : index
    %139 = vector.load %arg5[%c1_42, %c0_43] : memref<7x128xf32, #tpu.memory_space<vmem>>, vector<1x128xf32>
    %140 = vector.broadcast %139 : vector<1x128xf32> to vector<64x128xf32>
    %141 = arith.mulf %138, %140 : vector<64x128xf32>
    %142 = arith.addf %137, %141 : vector<64x128xf32>
    %c7 = arith.constant 7 : index
    %c0_44 = arith.constant 0 : index
    %143 = vector.load %arg8[%c7, %c0_44] : memref<80x128xf32, #tpu.memory_space<vmem>>, vector<64x128xf32>
    %c2_45 = arith.constant 2 : index
    %c0_46 = arith.constant 0 : index
    %144 = vector.load %arg5[%c2_45, %c0_46] : memref<7x128xf32, #tpu.memory_space<vmem>>, vector<1x128xf32>
    %145 = vector.broadcast %144 : vector<1x128xf32> to vector<64x128xf32>
    %146 = arith.mulf %143, %145 : vector<64x128xf32>
    %147 = arith.addf %142, %146 : vector<64x128xf32>
    %c8_47 = arith.constant 8 : index
    %c0_48 = arith.constant 0 : index
    %148 = vector.load %arg8[%c8_47, %c0_48] : memref<80x128xf32, #tpu.memory_space<vmem>>, vector<64x128xf32>
    %c3_49 = arith.constant 3 : index
    %c0_50 = arith.constant 0 : index
    %149 = vector.load %arg5[%c3_49, %c0_50] : memref<7x128xf32, #tpu.memory_space<vmem>>, vector<1x128xf32>
    %150 = vector.broadcast %149 : vector<1x128xf32> to vector<64x128xf32>
    %151 = arith.mulf %148, %150 : vector<64x128xf32>
    %152 = arith.addf %147, %151 : vector<64x128xf32>
    %c9 = arith.constant 9 : index
    %c0_51 = arith.constant 0 : index
    %153 = vector.load %arg8[%c9, %c0_51] : memref<80x128xf32, #tpu.memory_space<vmem>>, vector<64x128xf32>
    %c4_52 = arith.constant 4 : index
    %c0_53 = arith.constant 0 : index
    %154 = vector.load %arg5[%c4_52, %c0_53] : memref<7x128xf32, #tpu.memory_space<vmem>>, vector<1x128xf32>
    %155 = vector.broadcast %154 : vector<1x128xf32> to vector<64x128xf32>
    %156 = arith.mulf %153, %155 : vector<64x128xf32>
    %157 = arith.addf %152, %156 : vector<64x128xf32>
    %c10 = arith.constant 10 : index
    %c0_54 = arith.constant 0 : index
    %158 = vector.load %arg8[%c10, %c0_54] : memref<80x128xf32, #tpu.memory_space<vmem>>, vector<64x128xf32>
    %c5_55 = arith.constant 5 : index
    %c0_56 = arith.constant 0 : index
    %159 = vector.load %arg5[%c5_55, %c0_56] : memref<7x128xf32, #tpu.memory_space<vmem>>, vector<1x128xf32>
    %160 = vector.broadcast %159 : vector<1x128xf32> to vector<64x128xf32>
    %161 = arith.mulf %158, %160 : vector<64x128xf32>
    %162 = arith.addf %157, %161 : vector<64x128xf32>
    %c11 = arith.constant 11 : index
    %c0_57 = arith.constant 0 : index
    %163 = vector.load %arg8[%c11, %c0_57] : memref<80x128xf32, #tpu.memory_space<vmem>>, vector<64x128xf32>
    %c6_58 = arith.constant 6 : index
    %c0_59 = arith.constant 0 : index
    %164 = vector.load %arg5[%c6_58, %c0_59] : memref<7x128xf32, #tpu.memory_space<vmem>>, vector<1x128xf32>
    %165 = vector.broadcast %164 : vector<1x128xf32> to vector<64x128xf32>
    %166 = arith.mulf %163, %165 : vector<64x128xf32>
    %167 = arith.addf %162, %166 : vector<64x128xf32>
    %168 = vector.broadcast %5 : vector<1x128xf32> to vector<64x128xf32>
    %169 = arith.addf %167, %168 : vector<64x128xf32>
    %cst_60 = arith.constant 0.000000e+00 : f32
    %170 = vector.broadcast %cst_60 : f32 to vector<64x128xf32>
    %171 = arith.maximumf %169, %170 : vector<64x128xf32>
    %c0_61 = arith.constant 0 : index
    %172 = memref.load %arg6[%c0_61] : memref<2xf32, #tpu.memory_space<smem>>
    %173 = vector.broadcast %172 : f32 to vector<64x128xf32>
    %174 = arith.mulf %171, %173 : vector<64x128xf32>
    %c1_62 = arith.constant 1 : index
    %175 = memref.load %arg6[%c1_62] : memref<2xf32, #tpu.memory_space<smem>>
    %176 = vector.broadcast %175 : f32 to vector<64x128xf32>
    %177 = arith.addf %174, %176 : vector<64x128xf32>
    %c0_63 = arith.constant 0 : index
    %c0_64 = arith.constant 0 : index
    %c0_65 = arith.constant 0 : index
    %178 = vector.load %arg7[%c0_63, %c0_64, %c0_65] : memref<1x64x128xf32, #tpu.memory_space<vmem>>, vector<1x64x128xf32>
    %179 = vector.shape_cast %178 : vector<1x64x128xf32> to vector<64x128xf32>
    %180 = vector.shape_cast %177 : vector<64x128xf32> to vector<1x64x128xf32>
    tpu.vector_store %arg7[%c0_63, %c0_64, %c0_65], %180 {strides = array<i32>} : memref<1x64x128xf32, #tpu.memory_space<vmem>>, vector<1x64x128xf32>,
    return
  }
  func.func @transform_0(%arg0: i32, %arg1: i32) -> (i32, i32, i32) {
    %c0_i32 = arith.constant 0 : i32
    %c0_i32_0 = arith.constant 0 : i32
    return %arg0, %arg1, %c0_i32 : i32, i32, i32
  }
  func.func @transform_1(%arg0: i32, %arg1: i32) -> (i32, i32, i32) {
    %c0_i32 = arith.constant 0 : i32
    %c0_i32_0 = arith.constant 0 : i32
    return %arg0, %arg1, %c0_i32 : i32, i32, i32
  }
  func.func @transform_2(%arg0: i32, %arg1: i32) -> (i32, i32) {
    %c0_i32 = arith.constant 0 : i32
    %c0_i32_0 = arith.constant 0 : i32
    %c0_i32_1 = arith.constant 0 : i32
    return %c0_i32, %c0_i32_0 : i32, i32
  }
  func.func @transform_3(%arg0: i32, %arg1: i32) -> (i32, i32) {
    %c0_i32 = arith.constant 0 : i32
    %c0_i32_0 = arith.constant 0 : i32
    %c0_i32_1 = arith.constant 0 : i32
    return %c0_i32, %c0_i32_0 : i32, i32
  }
  func.func @transform_4(%arg0: i32, %arg1: i32) -> i32 {
    %c0_i32 = arith.constant 0 : i32
    %c0_i32_0 = arith.constant 0 : i32
    return %c0_i32 : i32
  }
  func.func @transform_5(%arg0: i32, %arg1: i32) -> (i32, i32, i32) {
    %c0_i32 = arith.constant 0 : i32
    %c0_i32_0 = arith.constant 0 : i32
    return %arg0, %arg1, %c0_i32 : i32, i32, i32
  }
}

</mosaic_0001>

<llo_original>
// kernel: conv_module_forward.1
$region0: #{conv_module_forward.1}
  #allocation0 [shape = 'u32[]', space=smem, size = 0x4, offset = 0x4, fixed_abs, tag = 'smem constant byte address 0x4 - core index']
  #allocation1 [shape = 'u32[72,128]{1,0:T(1,128)}', space=vmem, size = 0x9000, scoped, tag = 'internal scratch']
  #allocation2 [shape = 'f32[80,128]{1,0:T(8,128)}', space=vmem, size = 0xa000, scoped, tag = 'scratch operand']
  %s0 = inlined_call_operand.vmem [shape: f32[2,256,128], index: 0, kind: input, shape index: {}]
  %s1 = inlined_call_operand.vmem [shape: f32[2,64,128], index: 1, kind: input, shape index: {}]
  %s2 = inlined_call_operand.vmem [shape: f32[8,128], index: 2, kind: input, shape index: {}]
  %s3 = inlined_call_operand.vmem [shape: f32[7,128], index: 3, kind: input, shape index: {}]
  %s4 = inlined_call_operand.vmem [shape: f32[2], index: 4, kind: input, shape index: {}]
  %s5 = inlined_call_operand.vmem [shape: f32[2,256,128], index: 5, kind: output, shape index: {}]
  %s6 = sld [smem:[#allocation0]]
  $region61: #{conv_module_forward.1} parent=0
    _
  %s8 = ssub.s32 1, %s6
  %s9 = scalar_select 0, %s8, %s6
  $region1: #{conv_module_forward.1} parent=0
    #allocation3 [shape = 'u8[512]{0}', space=smem, size = 0x200, scoped, tag = 'input window, operand 4, single buffered']
    #allocation4 [shape = 's32[2]{0}', space=sflag, size = 0x8, scoped, tag = 'scoped memory for conv_module_forward.1']
    %10 = vsyncpa [#allocation4], 0
    loop: start=0, step=1, limit=10
    $region2: #{conv_module_forward.1} parent=1 // loop_pre_header
      _
    $region3: #{conv_module_forward.1} parent=1 // loop_header
      %s12 = sphi 0, %s16
      %p13 = scmp.ge.s32.totalorder %s12, 10
      %s19 = sphi 0, %s31
      %s20 = sphi 0, %s27
      %s21 = sphi 0, %s19
      %s22 = sphi 0, %s20
      %s23 = sphi 0, %s21
      %s24 = sphi 0, %s22
      %s36 = sphi 0, %s38
      %s39 = sphi 0, %s36
      %s40 = sphi 0, %s39
      %s56 = sphi 0, %s40
      %s64 = sphi 0, %s66
      %s67 = sphi 0, %s64
      %s68 = sphi 0, %s67
      %s84 = sphi 0, %s68
      %s88 = sphi 0, %s88
      %s90 = sphi 0, %s88
      %s91 = sphi 0, %s90
      %s105 = sphi 0, %s91
      %s109 = sphi 0, %s109
      %s111 = sphi 0, %s109
      %s112 = sphi 0, %s111
      %s126 = sphi 0, %s112
      %s130 = sphi 0, %s130
      %s132 = sphi 0, %s130
      %s133 = sphi 0, %s132
      %s147 = sphi 0, %s133
      %s155 = sphi 0, %s157
      %s158 = sphi 0, %s155
      %s159 = sphi 0, %s158
      %s175 = sphi 0, %s159
    $region4: #{conv_module_forward.1} parent=1 // loop_header_branch
      %15 = sbr.rel (%p13) target = $region8
    $region5: #{conv_module_forward.1} parent=1 // loop_body
      %s17 = ssub.s32 %s12, 1
      %s18 = ssub.s32 %s12, 2
      %s25 = sadd.s32 1, %s20
      %p26 = scmp.ge.s32.totalorder %s25, 4
      %s27 = scalar_select %p26, 0, %s25
      %s28 = sadd.s32 1, %s19
      %s29 = scalar_select %p26, %s28, %s19
      %p30 = scmp.ge.s32.totalorder %s29, 2
      %s31 = scalar_select %p30, 0, %s29
      %s32 = ssub.s32 %s19, %s31
      %s33 = ssub.s32 %s20, %s27
      %s34 = sor.u32 %s32, %s33
      %p35 = scmp.eq.s32.totalorder %s34, 0
      %s37 = sadd.s32 %s36, 1
      %s38 = scalar_select %p35, %s36, %s37
      %p41 = pneg %p35
      %p42 = scmp.eq.s32.totalorder %s12, 7
      %p43 = por %p41, %p42
      %p44 = scmp.ne.s32.totalorder %s36, %s39
      %p45 = scmp.eq.s32.totalorder %s12, 0
      %p46 = por %p44, %p45
      %p47 = scmp.ne.s32.totalorder %s36, %s39
      %p48 = scmp.eq.s32.totalorder %s17, 7
      %p49 = por %p47, %p48
      %p50 = scmp.ne.s32.totalorder %s39, %s40
      %p51 = scmp.eq.s32.totalorder %s17, 0
      %p52 = por %p50, %p51
      %p53 = scmp.ne.s32.totalorder %s39, %s40
      %p54 = scmp.eq.s32.totalorder %s18, 7
      %p55 = por %p53, %p54
      %p57 = scmp.ne.s32.totalorder %s40, %s56
      %p58 = scmp.eq.s32.totalorder %s18, 0
      %p59 = por %p57, %p58
      %s60 = ssub.s32 %s19, %s31
      %s61 = ssub.s32 %s20, %s27
      %s62 = sor.u32 %s60, %s61
      %p63 = scmp.eq.s32.totalorder %s62, 0
      %s65 = sadd.s32 %s64, 1
      %s66 = scalar_select %p63, %s64, %s65
      %p69 = pneg %p63
      %p70 = scmp.eq.s32.totalorder %s12, 7
      %p71 = por %p69, %p70
      %p72 = scmp.ne.s32.totalorder %s64, %s67
      %p73 = scmp.eq.s32.totalorder %s12, 0
      %p74 = por %p72, %p73
      %p75 = scmp.ne.s32.totalorder %s64, %s67
      %p76 = scmp.eq.s32.totalorder %s17, 7
      %p77 = por %p75, %p76
      %p78 = scmp.ne.s32.totalorder %s67, %s68
      %p79 = scmp.eq.s32.totalorder %s17, 0
      %p80 = por %p78, %p79
      %p81 = scmp.ne.s32.totalorder %s67, %s68
      %p82 = scmp.eq.s32.totalorder %s18, 7
      %p83 = por %p81, %p82
      %p85 = scmp.ne.s32.totalorder %s68, %s84
      %p86 = scmp.eq.s32.totalorder %s18, 0
      %p87 = por %p85, %p86
      %s89 = sadd.s32 %s88, 1
      %p92 = scmp.eq.s32.totalorder %s12, 7
      %p93 = scmp.ne.s32.totalorder %s88, %s90
      %p94 = scmp.eq.s32.totalorder %s12, 0
      %p95 = por %p93, %p94
      %p96 = scmp.ne.s32.totalorder %s88, %s90
      %p97 = scmp.eq.s32.totalorder %s17, 7
      %p98 = por %p96, %p97
      %p99 = scmp.ne.s32.totalorder %s90, %s91
      %p100 = scmp.eq.s32.totalorder %s17, 0
      %p101 = por %p99, %p100
      %p102 = scmp.ne.s32.totalorder %s90, %s91
      %p103 = scmp.eq.s32.totalorder %s18, 7
      %p104 = por %p102, %p103
      %p106 = scmp.ne.s32.totalorder %s91, %s105
      %p107 = scmp.eq.s32.totalorder %s18, 0
      %p108 = por %p106, %p107
      %s110 = sadd.s32 %s109, 1
      %p113 = scmp.eq.s32.totalorder %s12, 7
      %p114 = scmp.ne.s32.totalorder %s109, %s111
      %p115 = scmp.eq.s32.totalorder %s12, 0
      %p116 = por %p114, %p115
      %p117 = scmp.ne.s32.totalorder %s109, %s111
      %p118 = scmp.eq.s32.totalorder %s17, 7
      %p119 = por %p117, %p118
      %p120 = scmp.ne.s32.totalorder %s111, %s112
      %p121 = scmp.eq.s32.totalorder %s17, 0
      %p122 = por %p120, %p121
      %p123 = scmp.ne.s32.totalorder %s111, %s112
      %p124 = scmp.eq.s32.totalorder %s18, 7
      %p125 = por %p123, %p124
      %p127 = scmp.ne.s32.totalorder %s112, %s126
      %p128 = scmp.eq.s32.totalorder %s18, 0
      %p129 = por %p127, %p128
      %s131 = sadd.s32 %s130, 1
      %p134 = scmp.eq.s32.totalorder %s12, 7
      %p135 = scmp.ne.s32.totalorder %s130, %s132
      %p136 = scmp.eq.s32.totalorder %s12, 0
      %p137 = por %p135, %p136
      %p138 = scmp.ne.s32.totalorder %s130, %s132
      %p139 = scmp.eq.s32.totalorder %s17, 7
      %p140 = por %p138, %p139
      %p141 = scmp.ne.s32.totalorder %s132, %s133
      %p142 = scmp.eq.s32.totalorder %s17, 0
      %p143 = por %p141, %p142
      %p144 = scmp.ne.s32.totalorder %s132, %s133
      %p145 = scmp.eq.s32.totalorder %s18, 7
      %p146 = por %p144, %p145
      %p148 = scmp.ne.s32.totalorder %s133, %s147
      %p149 = scmp.eq.s32.totalorder %s18, 0
      %p150 = por %p148, %p149
      %s151 = ssub.s32 %s19, %s31
      %s152 = ssub.s32 %s20, %s27
      %s153 = sor.u32 %s151, %s152
      %p154 = scmp.eq.s32.totalorder %s153, 0
      %s156 = sadd.s32 %s155, 1
      %s157 = scalar_select %p154, %s155, %s156
      %p160 = pneg %p154
      %p161 = scmp.eq.s32.totalorder %s12, 7
      %p162 = por %p160, %p161
      %p163 = scmp.ne.s32.totalorder %s155, %s158
      %p164 = scmp.eq.s32.totalorder %s12, 0
      %p165 = por %p163, %p164
      %p166 = scmp.ne.s32.totalorder %s155, %s158
      %p167 = scmp.eq.s32.totalorder %s17, 7
      %p168 = por %p166, %p167
      %p169 = scmp.ne.s32.totalorder %s158, %s159
      %p170 = scmp.eq.s32.totalorder %s17, 0
      %p171 = por %p169, %p170
      %p172 = scmp.ne.s32.totalorder %s158, %s159
      %p173 = scmp.eq.s32.totalorder %s18, 7
      %p174 = por %p172, %p173
      %p176 = scmp.ne.s32.totalorder %s159, %s175
      %p177 = scmp.eq.s32.totalorder %s18, 0
      %p178 = por %p176, %p177
      %p179 = scmp.le.s32.totalorder 1, %s12
      %p180 = scmp.lt.s32.totalorder %s12, 9
      %p181 = pnand %p179, %p180
      %p182 = pneg %p181
      // Predicated region
      $region9: #{conv_module_forward.1} parent=5 // pred_check
        _
      $region10: #{conv_module_forward.1} parent=5 // pred_check_branch
        %184 = sbr.rel (%p181) target = $region12
      $region11: #{conv_module_forward.1} parent=5 // pred_region
        %s185 = ssub.s32 %s12, 1
        // Predicated region
        $region13: #{conv_module_forward.1} parent=11 // pred_check
          %p186 = pneg %p101
        $region14: #{conv_module_forward.1} parent=11 // pred_check_branch
          %188 = sbr.rel (%p186) target = $region16
        $region15: #{conv_module_forward.1} parent=11 // pred_region
          _
        $region16: #{conv_module_forward.1} parent=11 // pred_fallthru
          _
        // Predicated region
        $region17: #{conv_module_forward.1} parent=11 // pred_check
          %p189 = pneg %p122
        $region18: #{conv_module_forward.1} parent=11 // pred_check_branch
          %191 = sbr.rel (%p189) target = $region20
        $region19: #{conv_module_forward.1} parent=11 // pred_region
          _
        $region20: #{conv_module_forward.1} parent=11 // pred_fallthru
          _
        // Predicated region
        $region21: #{conv_module_forward.1} parent=11 // pred_check
          %p192 = pneg %p143
        $region22: #{conv_module_forward.1} parent=11 // pred_check_branch
          %194 = sbr.rel (%p192) target = $region24
        $region23: #{conv_module_forward.1} parent=11 // pred_region
          %196 = vsyncadd [#allocation4], 0
          %s198 = sshll.u32 %s4, 4
          %s199 = int_to_ptr.vmem [resolvable:$true] %s198
          %201 = dma.vmem_to_smem %s199, 16, [#allocation3], [#allocation4]
        $region24: #{conv_module_forward.1} parent=11 // pred_fallthru
          _
      $region12: #{conv_module_forward.1} parent=5 // pred_fallthru
        _
      %p202 = scmp.lt.s32.totalorder %s12, 8
      // Predicated region
      $region25: #{conv_module_forward.1} parent=5 // pred_check
        %p203 = pneg %p202
      $region26: #{conv_module_forward.1} parent=5 // pred_check_branch
        %205 = sbr.rel (%p203) target = $region28
      $region27: #{conv_module_forward.1} parent=5 // pred_region
        // Predicated region
        $region29: #{conv_module_forward.1} parent=27 // pred_check
          %p206 = pneg %p46
        $region30: #{conv_module_forward.1} parent=27 // pred_check_branch
          %208 = sbr.rel (%p206) target = $region32
        $region31: #{conv_module_forward.1} parent=27 // pred_region
          %s209 = smul.u32 8, %s20
          %p210 = scmp.lt.s32.totalorder %s19, 1
          %s211 = scalar_select %p210, %s19, 1
          %p212 = scmp.lt.s32.totalorder %s209, 31
          %s213 = scalar_select %p212, %s209, 31
          %s214 = smul.addr %s211, 32
          %s215 = sadd.s32 %s213, %s214
          %s216 = smul.addr %s215, 8
          %s217 = scalar_lea.vmem %s0, %s216
          %s218 = smul.u32 8, %s20
        $region32: #{conv_module_forward.1} parent=27 // pred_fallthru
          _
        // Predicated region
        $region33: #{conv_module_forward.1} parent=27 // pred_check
          %p219 = pneg %p74
        $region34: #{conv_module_forward.1} parent=27 // pred_check_branch
          %221 = sbr.rel (%p219) target = $region36
        $region35: #{conv_module_forward.1} parent=27 // pred_region
          %s222 = smul.u32 2, %s20
          %p223 = scmp.lt.s32.totalorder %s19, 1
          %s224 = scalar_select %p223, %s19, 1
          %p225 = scmp.lt.s32.totalorder %s222, 7
          %s226 = scalar_select %p225, %s222, 7
          %s227 = smul.addr %s224, 8
          %s228 = sadd.s32 %s226, %s227
          %s229 = smul.addr %s228, 8
          %s230 = scalar_lea.vmem %s1, %s229
          %s231 = smul.u32 2, %s20
        $region36: #{conv_module_forward.1} parent=27 // pred_fallthru
          _
      $region28: #{conv_module_forward.1} parent=5 // pred_fallthru
        _
      %p232 = scmp.le.s32.totalorder 1, %s12
      %p233 = scmp.lt.s32.totalorder %s12, 9
      %p234 = pnand %p232, %p233
      %p235 = pneg %p234
      // Predicated region
      $region37: #{conv_module_forward.1} parent=5 // pred_check
        _
      $region38: #{conv_module_forward.1} parent=5 // pred_check_branch
        %237 = sbr.rel (%p234) target = $region40
      $region39: #{conv_module_forward.1} parent=5 // pred_region
        %s238 = ssub.s32 %s12, 1
        // Predicated region
        $region41: #{conv_module_forward.1} parent=39 // pred_check
          %p239 = pneg %p143
        $region42: #{conv_module_forward.1} parent=39 // pred_check_branch
          %241 = sbr.rel (%p239) target = $region44
        $region43: #{conv_module_forward.1} parent=39 // pred_region
          %243 = dma.done [#allocation4], 16
        $region44: #{conv_module_forward.1} parent=39 // pred_fallthru
          _
        %244 = sfence
        %s245 = smul.u32 8, %s22
        %p246 = scmp.lt.s32.totalorder %s21, 1
        %s247 = scalar_select %p246, %s21, 1
        %p248 = scmp.lt.s32.totalorder %s245, 31
        %s249 = scalar_select %p248, %s245, 31
        %s250 = smul.addr %s247, 32
        %s251 = sadd.s32 %s249, %s250
        %s252 = smul.addr %s251, 8
        %s253 = scalar_lea.vmem %s0, %s252
        %p254 = pneg %p52
        %p255 = pneg %p49
        %s256 = smul.u32 2, %s22
        %p257 = scmp.lt.s32.totalorder %s21, 1
        %s258 = scalar_select %p257, %s21, 1
        %p259 = scmp.lt.s32.totalorder %s256, 7
        %s260 = scalar_select %p259, %s256, 7
        %s261 = smul.addr %s258, 8
        %s262 = sadd.s32 %s260, %s261
        %s263 = smul.addr %s262, 8
        %s264 = scalar_lea.vmem %s1, %s263
        %p265 = pneg %p80
        %p266 = pneg %p77
        %p267 = pneg %p101
        %p268 = pneg %p98
        %p269 = pneg %p122
        %p270 = pneg %p119
        %p271 = pneg %p143
        %p272 = pneg %p140
        %p273 = pneg %p171
        %p274 = pneg %p168
        %s275 = smul.u32 8, %s22
        %p276 = scmp.lt.s32.totalorder %s21, 1
        %s277 = scalar_select %p276, %s21, 1
        %p278 = scmp.lt.s32.totalorder %s275, 31
        %s279 = scalar_select %p278, %s275, 31
        %s280 = smul.addr %s277, 32
        %s281 = sadd.s32 %s279, %s280
        %s282 = smul.addr %s281, 8
        %s283 = scalar_lea.vmem %s5, %s282
        %s284 = smul.u32 8, %s22
        %p285 = scmp.lt.s32.totalorder %s21, 1
        %s286 = scalar_select %p285, %s21, 1
        %p287 = scmp.lt.s32.totalorder %s284, 31
        %s288 = scalar_select %p287, %s284, 31
        %s289 = smul.addr %s286, 32
        %s290 = sadd.s32 %s288, %s289
        %s291 = smul.addr %s290, 8
        %s292 = scalar_lea.vmem %s0, %s291
        %s293 = smul.u32 8, %s22
        %s294 = smul.u32 2, %s22
        %p295 = scmp.lt.s32.totalorder %s21, 1
        %s296 = scalar_select %p295, %s21, 1
        %p297 = scmp.lt.s32.totalorder %s294, 7
        %s298 = scalar_select %p297, %s294, 7
        %s299 = smul.addr %s296, 8
        %s300 = sadd.s32 %s298, %s299
        %s301 = smul.addr %s300, 8
        %s302 = scalar_lea.vmem %s1, %s301
        %s303 = smul.u32 2, %s22
        %s304 = smul.u32 8, %s22
        %p305 = scmp.lt.s32.totalorder %s21, 1
        %s306 = scalar_select %p305, %s21, 1
        %p307 = scmp.lt.s32.totalorder %s304, 31
        %s308 = scalar_select %p307, %s304, 31
        %s309 = smul.addr %s306, 32
        %s310 = sadd.s32 %s308, %s309
        %s311 = smul.addr %s310, 8
        %s312 = scalar_lea.vmem %s5, %s311
        %s313 = smul.u32 8, %s22
        %s314 = smul.u32 %s22, 64
        %v315 = vld [vmem:[%s2] sm:$0x1]
        %v316 = vld [vmem:[%s2 + $0x1] sm:$0x1]
        %v317 = vld [vmem:[%s2 + $0x2] sm:$0x1]
        %v318 = vld [vmem:[%s2 + $0x3] sm:$0x1]
        %v319 = vld [vmem:[%s2 + $0x4] sm:$0x1]
        %v320 = vld [vmem:[%s302] sm:$0xff]
        %v321 = vld [vmem:[%s302 + $0x8] sm:$0xff]
        %s322 = ssub.s32 %s314, 8
        %323 = vadd.xlane.f32.xlu0 %v320
        %v324 = vpop.xlane.xlu0 %323
        %v325 = vrcp.pop 128.0
        %v326 = vmul.f32 128.0, %v325
        %v327 = vsub.f32 1.0, %v326
        %v328 = vmul.f32 %v325, %v327
        %v329 = vadd.f32 %v325, %v328
        %vm330 = vweird.f32 %v325
        %v331 = vsel %vm330, %v325, %v329
        %v332 = vmul.f32 %v324, %v331
        %v333 = vsub.f32 %v320, %v332
        %v334 = vmul.f32 %v333, %v333
        %335 = vadd.xlane.f32.xlu0 %v334
        %v336 = vpop.xlane.xlu0 %335
        %v337 = vmul.f32 %v336, %v331
        %v338 = vadd.f32 %v337, 1e-05
        %v339 = vrsqrt.pop %v338
        %v340 = vmul.f32 %v339, %v338
        %v341 = vmul.f32 %v340, %v339
        %v342 = vmul.f32 0.5, %v341
        %v343 = vsub.f32 1.5, %v342
        %v344 = vmul.f32 %v339, %v343
        %vm345 = vweird.f32 %v338
        %vm346 = vweird.f32 %v339
        %vm347 = vmor %vm345, %vm346
        %v348 = vsel %vm347, %v339, %v344
        %v349 = vmul.f32 %v333, %v348
        %v350 = vperm.slane %v315, 0
        %v351 = vmul.f32 %v349, %v350
        %v352 = vperm.slane %v316, 0
        %v353 = vadd.f32 %v351, %v352
        %v354 = vperm.slane %v317, 0
        %v355 = vmul.f32 %v349, %v354
        %v356 = vperm.slane %v318, 0
        %v357 = vadd.f32 %v355, %v356
        %v358 = vxor.u32 %v357, 2147483648
        %v359 = vmul.f32 %v358, 1.442695
        %v360 = vpow.pop %v359
        %v361 = vadd.f32 %v360, 1.0
        %v362 = vrcp.pop %v361
        %v363 = vmul.f32 %v361, %v362
        %v364 = vsub.f32 1.0, %v363
        %v365 = vmul.f32 %v362, %v364
        %v366 = vadd.f32 %v362, %v365
        %vm367 = vweird.f32 %v361
        %vm368 = vweird.f32 %v362
        %vm369 = vmor %vm367, %vm368
        %v370 = vsel %vm369, %v362, %v366
        %v371 = vand.u32 2147483647, %v361
        %vm372 = vcmp.eq.f32.partialorder %v371, 8.507059e+37
        %v373 = vand.u32 %v361, 2147483648
        %v374 = vor.u32 1.1754944e-38, %v373
        %v375 = vsel %vm372, %v374, %v370
        %v376 = vmul.f32 1.0, %v375
        %v377 = vmul.f32 %v353, %v376
        %v378 = vlaneseq
        %v379 = vshrl.u32 %v378, 7
        %v380 = vstv %s322
        %v381 = vadd.s32 %v379, %v380
        %vm382 = vcmp.ge.s32.totalorder %v381, 0
        %vm383 = vcmp.lt.s32.totalorder %v381, 200
        %vm384 = vmand %vm382, %vm383
        %v385 = vsel %vm384, 1, 0
        %vm386 = vcmp.eq.s32.totalorder %v385, 1
        %v387 = vsel %vm386, %v377, 0.0
        %388 = vst [vmem:[#allocation2] sm:$0xff] %v387
        %v389 = vld [vmem:[%s292] sm:$0xff]
        %v390 = vld [vmem:[%s292 + $0x8] sm:$0xff]
        %v391 = vld [vmem:[%s292 + $0x10] sm:$0xff]
        %v392 = vld [vmem:[%s292 + $0x18] sm:$0xff]
        %v393 = vld [vmem:[%s292 + $0x20] sm:$0xff]
        %v394 = vld [vmem:[%s292 + $0x28] sm:$0xff]
        %v395 = vld [vmem:[%s292 + $0x30] sm:$0xff]
        %v396 = vld [vmem:[%s292 + $0x38] sm:$0xff]
        %397 = vadd.xlane.f32.xlu0 %v389
        %v398 = vpop.xlane.xlu0 %397
        %399 = vadd.xlane.f32.xlu0 %v390
        %v400 = vpop.xlane.xlu0 %399
        %401 = vadd.xlane.f32.xlu0 %v391
        %v402 = vpop.xlane.xlu0 %401
        %403 = vadd.xlane.f32.xlu0 %v392
        %v404 = vpop.xlane.xlu0 %403
        %405 = vadd.xlane.f32.xlu0 %v393
        %v406 = vpop.xlane.xlu0 %405
        %407 = vadd.xlane.f32.xlu0 %v394
        %v408 = vpop.xlane.xlu0 %407
        %409 = vadd.xlane.f32.xlu0 %v395
        %v410 = vpop.xlane.xlu0 %409
        %411 = vadd.xlane.f32.xlu0 %v396
        %v412 = vpop.xlane.xlu0 %411
        %v413 = vmul.f32 %v398, %v331
        %v414 = vmul.f32 %v400, %v331
        %v415 = vmul.f32 %v402, %v331
        %v416 = vmul.f32 %v404, %v331
        %v417 = vmul.f32 %v406, %v331
        %v418 = vmul.f32 %v408, %v331
        %v419 = vmul.f32 %v410, %v331
        %v420 = vmul.f32 %v412, %v331
        %v421 = vsub.f32 %v389, %v413
        %v422 = vsub.f32 %v390, %v414
        %v423 = vsub.f32 %v391, %v415
        %v424 = vsub.f32 %v392, %v416
        %v425 = vsub.f32 %v393, %v417
        %v426 = vsub.f32 %v394, %v418
        %v427 = vsub.f32 %v395, %v419
        %v428 = vsub.f32 %v396, %v420
        %v429 = vmul.f32 %v421, %v421
        %v430 = vmul.f32 %v422, %v422
        %v431 = vmul.f32 %v423, %v423
        %v432 = vmul.f32 %v424, %v424
        %v433 = vmul.f32 %v425, %v425
        %v434 = vmul.f32 %v426, %v426
        %v435 = vmul.f32 %v427, %v427
        %v436 = vmul.f32 %v428, %v428
        %437 = vadd.xlane.f32.xlu0 %v429
        %v438 = vpop.xlane.xlu0 %437
        %439 = vadd.xlane.f32.xlu0 %v430
        %v440 = vpop.xlane.xlu0 %439
        %441 = vadd.xlane.f32.xlu0 %v431
        %v442 = vpop.xlane.xlu0 %441
        %443 = vadd.xlane.f32.xlu0 %v432
        %v444 = vpop.xlane.xlu0 %443
        %445 = vadd.xlane.f32.xlu0 %v433
        %v446 = vpop.xlane.xlu0 %445
        %447 = vadd.xlane.f32.xlu0 %v434
        %v448 = vpop.xlane.xlu0 %447
        %449 = vadd.xlane.f32.xlu0 %v435
        %v450 = vpop.xlane.xlu0 %449
        %451 = vadd.xlane.f32.xlu0 %v436
        %v452 = vpop.xlane.xlu0 %451
        %v453 = vmul.f32 %v438, %v331
        %v454 = vmul.f32 %v440, %v331
        %v455 = vmul.f32 %v442, %v331
        %v456 = vmul.f32 %v444, %v331
        %v457 = vmul.f32 %v446, %v331
        %v458 = vmul.f32 %v448, %v331
        %v459 = vmul.f32 %v450, %v331
        %v460 = vmul.f32 %v452, %v331
        %v461 = vadd.f32 %v453, 1e-05
        %v462 = vadd.f32 %v454, 1e-05
        %v463 = vadd.f32 %v455, 1e-05
        %v464 = vadd.f32 %v456, 1e-05
        %v465 = vadd.f32 %v457, 1e-05
        %v466 = vadd.f32 %v458, 1e-05
        %v467 = vadd.f32 %v459, 1e-05
        %v468 = vadd.f32 %v460, 1e-05
        %v469 = vrsqrt.pop %v461
        %v470 = vmul.f32 %v469, %v461
        %v471 = vmul.f32 %v470, %v469
        %v472 = vmul.f32 0.5, %v471
        %v473 = vsub.f32 1.5, %v472
        %v474 = vmul.f32 %v469, %v473
        %vm475 = vweird.f32 %v461
        %vm476 = vweird.f32 %v469
        %vm477 = vmor %vm475, %vm476
        %v478 = vsel %vm477, %v469, %v474
        %v479 = vrsqrt.pop %v462
        %v480 = vmul.f32 %v479, %v462
        %v481 = vmul.f32 %v480, %v479
        %v482 = vmul.f32 0.5, %v481
        %v483 = vsub.f32 1.5, %v482
        %v484 = vmul.f32 %v479, %v483
        %vm485 = vweird.f32 %v462
        %vm486 = vweird.f32 %v479
        %vm487 = vmor %vm485, %vm486
        %v488 = vsel %vm487, %v479, %v484
        %v489 = vrsqrt.pop %v463
        %v490 = vmul.f32 %v489, %v463
        %v491 = vmul.f32 %v490, %v489
        %v492 = vmul.f32 0.5, %v491
        %v493 = vsub.f32 1.5, %v492
        %v494 = vmul.f32 %v489, %v493
        %vm495 = vweird.f32 %v463
        %vm496 = vweird.f32 %v489
        %vm497 = vmor %vm495, %vm496
        %v498 = vsel %vm497, %v489, %v494
        %v499 = vrsqrt.pop %v464
        %v500 = vmul.f32 %v499, %v464
        %v501 = vmul.f32 %v500, %v499
        %v502 = vmul.f32 0.5, %v501
        %v503 = vsub.f32 1.5, %v502
        %v504 = vmul.f32 %v499, %v503
        %vm505 = vweird.f32 %v464
        %vm506 = vweird.f32 %v499
        %vm507 = vmor %vm505, %vm506
        %v508 = vsel %vm507, %v499, %v504
        %v509 = vrsqrt.pop %v465
        %v510 = vmul.f32 %v509, %v465
        %v511 = vmul.f32 %v510, %v509
        %v512 = vmul.f32 0.5, %v511
        %v513 = vsub.f32 1.5, %v512
        %v514 = vmul.f32 %v509, %v513
        %vm515 = vweird.f32 %v465
        %vm516 = vweird.f32 %v509
        %vm517 = vmor %vm515, %vm516
        %v518 = vsel %vm517, %v509, %v514
        %v519 = vrsqrt.pop %v466
        %v520 = vmul.f32 %v519, %v466
        %v521 = vmul.f32 %v520, %v519
        %v522 = vmul.f32 0.5, %v521
        %v523 = vsub.f32 1.5, %v522
        %v524 = vmul.f32 %v519, %v523
        %vm525 = vweird.f32 %v466
        %vm526 = vweird.f32 %v519
        %vm527 = vmor %vm525, %vm526
        %v528 = vsel %vm527, %v519, %v524
        %v529 = vrsqrt.pop %v467
        %v530 = vmul.f32 %v529, %v467
        %v531 = vmul.f32 %v530, %v529
        %v532 = vmul.f32 0.5, %v531
        %v533 = vsub.f32 1.5, %v532
        %v534 = vmul.f32 %v529, %v533
        %vm535 = vweird.f32 %v467
        %vm536 = vweird.f32 %v529
        %vm537 = vmor %vm535, %vm536
        %v538 = vsel %vm537, %v529, %v534
        %v539 = vrsqrt.pop %v468
        %v540 = vmul.f32 %v539, %v468
        %v541 = vmul.f32 %v540, %v539
        %v542 = vmul.f32 0.5, %v541
        %v543 = vsub.f32 1.5, %v542
        %v544 = vmul.f32 %v539, %v543
        %vm545 = vweird.f32 %v468
        %vm546 = vweird.f32 %v539
        %vm547 = vmor %vm545, %vm546
        %v548 = vsel %vm547, %v539, %v544
        %v549 = vmul.f32 %v421, %v478
        %v550 = vmul.f32 %v422, %v488
        %v551 = vmul.f32 %v423, %v498
        %v552 = vmul.f32 %v424, %v508
        %v553 = vmul.f32 %v425, %v518
        %v554 = vmul.f32 %v426, %v528
        %v555 = vmul.f32 %v427, %v538
        %v556 = vmul.f32 %v428, %v548
        %v557 = vmul.f32 %v549, %v350
        %v558 = vmul.f32 %v550, %v350
        %v559 = vmul.f32 %v551, %v350
        %v560 = vmul.f32 %v552, %v350
        %v561 = vmul.f32 %v553, %v350
        %v562 = vmul.f32 %v554, %v350
        %v563 = vmul.f32 %v555, %v350
        %v564 = vmul.f32 %v556, %v350
        %v565 = vadd.f32 %v557, %v352
        %v566 = vadd.f32 %v558, %v352
        %v567 = vadd.f32 %v559, %v352
        %v568 = vadd.f32 %v560, %v352
        %v569 = vadd.f32 %v561, %v352
        %v570 = vadd.f32 %v562, %v352
        %v571 = vadd.f32 %v563, %v352
        %v572 = vadd.f32 %v564, %v352
        %v573 = vmul.f32 %v549, %v354
        %v574 = vmul.f32 %v550, %v354
        %v575 = vmul.f32 %v551, %v354
        %v576 = vmul.f32 %v552, %v354
        %v577 = vmul.f32 %v553, %v354
        %v578 = vmul.f32 %v554, %v354
        %v579 = vmul.f32 %v555, %v354
        %v580 = vmul.f32 %v556, %v354
        %v581 = vadd.f32 %v573, %v356
        %v582 = vadd.f32 %v574, %v356
        %v583 = vadd.f32 %v575, %v356
        %v584 = vadd.f32 %v576, %v356
        %v585 = vadd.f32 %v577, %v356
        %v586 = vadd.f32 %v578, %v356
        %v587 = vadd.f32 %v579, %v356
        %v588 = vadd.f32 %v580, %v356
        %v589 = vxor.u32 %v581, 2147483648
        %v590 = vxor.u32 %v582, 2147483648
        %v591 = vxor.u32 %v583, 2147483648
        %v592 = vxor.u32 %v584, 2147483648
        %v593 = vxor.u32 %v585, 2147483648
        %v594 = vxor.u32 %v586, 2147483648
        %v595 = vxor.u32 %v587, 2147483648
        %v596 = vxor.u32 %v588, 2147483648
        %v597 = vmul.f32 %v589, 1.442695
        %v598 = vpow.pop %v597
        %v599 = vmul.f32 %v590, 1.442695
        %v600 = vpow.pop %v599
        %v601 = vmul.f32 %v591, 1.442695
        %v602 = vpow.pop %v601
        %v603 = vmul.f32 %v592, 1.442695
        %v604 = vpow.pop %v603
        %v605 = vmul.f32 %v593, 1.442695
        %v606 = vpow.pop %v605
        %v607 = vmul.f32 %v594, 1.442695
        %v608 = vpow.pop %v607
        %v609 = vmul.f32 %v595, 1.442695
        %v610 = vpow.pop %v609
        %v611 = vmul.f32 %v596, 1.442695
        %v612 = vpow.pop %v611
        %v613 = vadd.f32 %v598, 1.0
        %v614 = vadd.f32 %v600, 1.0
        %v615 = vadd.f32 %v602, 1.0
        %v616 = vadd.f32 %v604, 1.0
        %v617 = vadd.f32 %v606, 1.0
        %v618 = vadd.f32 %v608, 1.0
        %v619 = vadd.f32 %v610, 1.0
        %v620 = vadd.f32 %v612, 1.0
        %v621 = vrcp.pop %v613
        %v622 = vmul.f32 %v613, %v621
        %v623 = vsub.f32 1.0, %v622
        %v624 = vmul.f32 %v621, %v623
        %v625 = vadd.f32 %v621, %v624
        %vm626 = vweird.f32 %v613
        %vm627 = vweird.f32 %v621
        %vm628 = vmor %vm626, %vm627
        %v629 = vsel %vm628, %v621, %v625
        %v630 = vand.u32 2147483647, %v613
        %vm631 = vcmp.eq.f32.partialorder %v630, 8.507059e+37
        %v632 = vand.u32 %v613, 2147483648
        %v633 = vor.u32 1.1754944e-38, %v632
        %v634 = vsel %vm631, %v633, %v629
        %v635 = vmul.f32 1.0, %v634
        %v636 = vrcp.pop %v614
        %v637 = vmul.f32 %v614, %v636
        %v638 = vsub.f32 1.0, %v637
        %v639 = vmul.f32 %v636, %v638
        %v640 = vadd.f32 %v636, %v639
        %vm641 = vweird.f32 %v614
        %vm642 = vweird.f32 %v636
        %vm643 = vmor %vm641, %vm642
        %v644 = vsel %vm643, %v636, %v640
        %v645 = vand.u32 2147483647, %v614
        %vm646 = vcmp.eq.f32.partialorder %v645, 8.507059e+37
        %v647 = vand.u32 %v614, 2147483648
        %v648 = vor.u32 1.1754944e-38, %v647
        %v649 = vsel %vm646, %v648, %v644
        %v650 = vmul.f32 1.0, %v649
        %v651 = vrcp.pop %v615
        %v652 = vmul.f32 %v615, %v651
        %v653 = vsub.f32 1.0, %v652
        %v654 = vmul.f32 %v651, %v653
        %v655 = vadd.f32 %v651, %v654
        %vm656 = vweird.f32 %v615
        %vm657 = vweird.f32 %v651
        %vm658 = vmor %vm656, %vm657
        %v659 = vsel %vm658, %v651, %v655
        %v660 = vand.u32 2147483647, %v615
        %vm661 = vcmp.eq.f32.partialorder %v660, 8.507059e+37
        %v662 = vand.u32 %v615, 2147483648
        %v663 = vor.u32 1.1754944e-38, %v662
        %v664 = vsel %vm661, %v663, %v659
        %v665 = vmul.f32 1.0, %v664
        %v666 = vrcp.pop %v616
        %v667 = vmul.f32 %v616, %v666
        %v668 = vsub.f32 1.0, %v667
        %v669 = vmul.f32 %v666, %v668
        %v670 = vadd.f32 %v666, %v669
        %vm671 = vweird.f32 %v616
        %vm672 = vweird.f32 %v666
        %vm673 = vmor %vm671, %vm672
        %v674 = vsel %vm673, %v666, %v670
        %v675 = vand.u32 2147483647, %v616
        %vm676 = vcmp.eq.f32.partialorder %v675, 8.507059e+37
        %v677 = vand.u32 %v616, 2147483648
        %v678 = vor.u32 1.1754944e-38, %v677
        %v679 = vsel %vm676, %v678, %v674
        %v680 = vmul.f32 1.0, %v679
        %v681 = vrcp.pop %v617
        %v682 = vmul.f32 %v617, %v681
        %v683 = vsub.f32 1.0, %v682
        %v684 = vmul.f32 %v681, %v683
        %v685 = vadd.f32 %v681, %v684
        %vm686 = vweird.f32 %v617
        %vm687 = vweird.f32 %v681
        %vm688 = vmor %vm686, %vm687
        %v689 = vsel %vm688, %v681, %v685
        %v690 = vand.u32 2147483647, %v617
        %vm691 = vcmp.eq.f32.partialorder %v690, 8.507059e+37
        %v692 = vand.u32 %v617, 2147483648
        %v693 = vor.u32 1.1754944e-38, %v692
        %v694 = vsel %vm691, %v693, %v689
        %v695 = vmul.f32 1.0, %v694
        %v696 = vrcp.pop %v618
        %v697 = vmul.f32 %v618, %v696
        %v698 = vsub.f32 1.0, %v697
        %v699 = vmul.f32 %v696, %v698
        %v700 = vadd.f32 %v696, %v699
        %vm701 = vweird.f32 %v618
        %vm702 = vweird.f32 %v696
        %vm703 = vmor %vm701, %vm702
        %v704 = vsel %vm703, %v696, %v700
        %v705 = vand.u32 2147483647, %v618
        %vm706 = vcmp.eq.f32.partialorder %v705, 8.507059e+37
        %v707 = vand.u32 %v618, 2147483648
        %v708 = vor.u32 1.1754944e-38, %v707
        %v709 = vsel %vm706, %v708, %v704
        %v710 = vmul.f32 1.0, %v709
        %v711 = vrcp.pop %v619
        %v712 = vmul.f32 %v619, %v711
        %v713 = vsub.f32 1.0, %v712
        %v714 = vmul.f32 %v711, %v713
        %v715 = vadd.f32 %v711, %v714
        %vm716 = vweird.f32 %v619
        %vm717 = vweird.f32 %v711
        %vm718 = vmor %vm716, %vm717
        %v719 = vsel %vm718, %v711, %v715
        %v720 = vand.u32 2147483647, %v619
        %vm721 = vcmp.eq.f32.partialorder %v720, 8.507059e+37
        %v722 = vand.u32 %v619, 2147483648
        %v723 = vor.u32 1.1754944e-38, %v722
        %v724 = vsel %vm721, %v723, %v719
        %v725 = vmul.f32 1.0, %v724
        %v726 = vrcp.pop %v620
        %v727 = vmul.f32 %v620, %v726
        %v728 = vsub.f32 1.0, %v727
        %v729 = vmul.f32 %v726, %v728
        %v730 = vadd.f32 %v726, %v729
        %vm731 = vweird.f32 %v620
        %vm732 = vweird.f32 %v726
        %vm733 = vmor %vm731, %vm732
        %v734 = vsel %vm733, %v726, %v730
        %v735 = vand.u32 2147483647, %v620
        %vm736 = vcmp.eq.f32.partialorder %v735, 8.507059e+37
        %v737 = vand.u32 %v620, 2147483648
        %v738 = vor.u32 1.1754944e-38, %v737
        %v739 = vsel %vm736, %v738, %v734
        %v740 = vmul.f32 1.0, %v739
        %v741 = vmul.f32 %v565, %v635
        %v742 = vmul.f32 %v566, %v650
        %v743 = vmul.f32 %v567, %v665
        %v744 = vmul.f32 %v568, %v680
        %v745 = vmul.f32 %v569, %v695
        %v746 = vmul.f32 %v570, %v710
        %v747 = vmul.f32 %v571, %v725
        %v748 = vmul.f32 %v572, %v740
        %749 = vst [vmem:[#allocation2 + $0x8] sm:$0xff] %v741
        %750 = vst [vmem:[#allocation2 + $0x10] sm:$0xff] %v742
        %751 = vst [vmem:[#allocation2 + $0x18] sm:$0xff] %v743
        %752 = vst [vmem:[#allocation2 + $0x20] sm:$0xff] %v744
        %753 = vst [vmem:[#allocation2 + $0x28] sm:$0xff] %v745
        %754 = vst [vmem:[#allocation2 + $0x30] sm:$0xff] %v746
        %755 = vst [vmem:[#allocation2 + $0x38] sm:$0xff] %v747
        %756 = vst [vmem:[#allocation2 + $0x40] sm:$0xff] %v748
        %p757 = scmp.eq.s32.totalorder %s22, 3
        // Predicated region
        $region45: #{conv_module_forward.1} parent=39 // pred_check
          %p758 = pneg %p757
        $region46: #{conv_module_forward.1} parent=39 // pred_check_branch
          %760 = sbr.rel (%p758) target = $region48
        $region47: #{conv_module_forward.1} parent=39 // pred_region
          %v761 = vadd.s32 %v379, 8
          %v762 = vadd.s32 %v379, 16
          %v763 = vadd.s32 %v379, 24
          %v764 = vadd.s32 %v379, 32
          %v765 = vadd.s32 %v379, 40
          %v766 = vadd.s32 %v379, 48
          %v767 = vadd.s32 %v379, 56
          %v768 = vstv %s314
          %v769 = vadd.s32 %v379, %v768
          %v770 = vadd.s32 %v761, %v768
          %v771 = vadd.s32 %v762, %v768
          %v772 = vadd.s32 %v763, %v768
          %v773 = vadd.s32 %v764, %v768
          %v774 = vadd.s32 %v765, %v768
          %v775 = vadd.s32 %v766, %v768
          %v776 = vadd.s32 %v767, %v768
          %vm777 = vcmp.lt.s32.totalorder %v769, 200
          %vm778 = vcmp.lt.s32.totalorder %v770, 200
          %vm779 = vcmp.lt.s32.totalorder %v771, 200
          %vm780 = vcmp.lt.s32.totalorder %v772, 200
          %vm781 = vcmp.lt.s32.totalorder %v773, 200
          %vm782 = vcmp.lt.s32.totalorder %v774, 200
          %vm783 = vcmp.lt.s32.totalorder %v775, 200
          %vm784 = vcmp.lt.s32.totalorder %v776, 200
          %v785 = vld [vmem:[#allocation2 + $0x8] sm:$0xff]
          %v786 = vld [vmem:[#allocation2 + $0x10] sm:$0xff]
          %v787 = vld [vmem:[#allocation2 + $0x18] sm:$0xff]
          %v788 = vld [vmem:[#allocation2 + $0x20] sm:$0xff]
          %v789 = vld [vmem:[#allocation2 + $0x28] sm:$0xff]
          %v790 = vld [vmem:[#allocation2 + $0x30] sm:$0xff]
          %v791 = vld [vmem:[#allocation2 + $0x38] sm:$0xff]
          %v792 = vld [vmem:[#allocation2 + $0x40] sm:$0xff]
          %v793 = vsel %vm777, 1, 0
          %v794 = vsel %vm778, 1, 0
          %v795 = vsel %vm779, 1, 0
          %v796 = vsel %vm780, 1, 0
          %v797 = vsel %vm781, 1, 0
          %v798 = vsel %vm782, 1, 0
          %v799 = vsel %vm783, 1, 0
          %v800 = vsel %vm784, 1, 0
          %vm801 = vcmp.eq.s32.totalorder %v793, 1
          %vm802 = vcmp.eq.s32.totalorder %v794, 1
          %vm803 = vcmp.eq.s32.totalorder %v795, 1
          %vm804 = vcmp.eq.s32.totalorder %v796, 1
          %vm805 = vcmp.eq.s32.totalorder %v797, 1
          %vm806 = vcmp.eq.s32.totalorder %v798, 1
          %vm807 = vcmp.eq.s32.totalorder %v799, 1
          %vm808 = vcmp.eq.s32.totalorder %v800, 1
          %v809 = vsel %vm801, %v785, 0.0
          %v810 = vsel %vm802, %v786, 0.0
          %v811 = vsel %vm803, %v787, 0.0
          %v812 = vsel %vm804, %v788, 0.0
          %v813 = vsel %vm805, %v789, 0.0
          %v814 = vsel %vm806, %v790, 0.0
          %v815 = vsel %vm807, %v791, 0.0
          %v816 = vsel %vm808, %v792, 0.0
          %817 = vst [vmem:[#allocation2 + $0x8] sm:$0xff] %v809
          %818 = vst [vmem:[#allocation2 + $0x10] sm:$0xff] %v810
          %819 = vst [vmem:[#allocation2 + $0x18] sm:$0xff] %v811
          %820 = vst [vmem:[#allocation2 + $0x20] sm:$0xff] %v812
          %821 = vst [vmem:[#allocation2 + $0x28] sm:$0xff] %v813
          %822 = vst [vmem:[#allocation2 + $0x30] sm:$0xff] %v814
          %823 = vst [vmem:[#allocation2 + $0x38] sm:$0xff] %v815
          %824 = vst [vmem:[#allocation2 + $0x40] sm:$0xff] %v816
        $region48: #{conv_module_forward.1} parent=39 // pred_fallthru
          _
        %s825 = sadd.s32 %s314, 64
        %826 = vadd.xlane.f32.xlu0 %v321
        %v827 = vpop.xlane.xlu0 %826
        %v828 = vmul.f32 %v827, %v331
        %v829 = vsub.f32 %v321, %v828
        %v830 = vmul.f32 %v829, %v829
        %831 = vadd.xlane.f32.xlu0 %v830
        %v832 = vpop.xlane.xlu0 %831
        %v833 = vmul.f32 %v832, %v331
        %v834 = vadd.f32 %v833, 1e-05
        %v835 = vrsqrt.pop %v834
        %v836 = vmul.f32 %v835, %v834
        %v837 = vmul.f32 %v836, %v835
        %v838 = vmul.f32 0.5, %v837
        %v839 = vsub.f32 1.5, %v838
        %v840 = vmul.f32 %v835, %v839
        %vm841 = vweird.f32 %v834
        %vm842 = vweird.f32 %v835
        %vm843 = vmor %vm841, %vm842
        %v844 = vsel %vm843, %v835, %v840
        %v845 = vmul.f32 %v829, %v844
        %v846 = vmul.f32 %v845, %v350
        %v847 = vadd.f32 %v846, %v352
        %v848 = vmul.f32 %v845, %v354
        %v849 = vadd.f32 %v848, %v356
        %v850 = vxor.u32 %v849, 2147483648
        %v851 = vmul.f32 %v850, 1.442695
        %v852 = vpow.pop %v851
        %v853 = vadd.f32 %v852, 1.0
        %v854 = vrcp.pop %v853
        %v855 = vmul.f32 %v853, %v854
        %v856 = vsub.f32 1.0, %v855
        %v857 = vmul.f32 %v854, %v856
        %v858 = vadd.f32 %v854, %v857
        %vm859 = vweird.f32 %v853
        %vm860 = vweird.f32 %v854
        %vm861 = vmor %vm859, %vm860
        %v862 = vsel %vm861, %v854, %v858
        %v863 = vand.u32 2147483647, %v853
        %vm864 = vcmp.eq.f32.partialorder %v863, 8.507059e+37
        %v865 = vand.u32 %v853, 2147483648
        %v866 = vor.u32 1.1754944e-38, %v865
        %v867 = vsel %vm864, %v866, %v862
        %v868 = vmul.f32 1.0, %v867
        %v869 = vmul.f32 %v847, %v868
        %v870 = vstv %s825
        %v871 = vadd.s32 %v379, %v870
        %vm872 = vcmp.ge.s32.totalorder %v871, 0
        %vm873 = vcmp.lt.s32.totalorder %v871, 200
        %vm874 = vmand %vm872, %vm873
        %v875 = vsel %vm874, 1, 0
        %vm876 = vcmp.eq.s32.totalorder %v875, 1
        %v877 = vsel %vm876, %v869, 0.0
        %878 = vst [vmem:[#allocation2 + $0x48] sm:$0xff] %v877
        %v879 = vld [vmem:[#allocation2 + $0x5] sm:$0xff]
        %v880 = vld [vmem:[#allocation2 + $0xd] sm:$0xff]
        %v881 = vld [vmem:[#allocation2 + $0x15] sm:$0xff]
        %v882 = vld [vmem:[#allocation2 + $0x1d] sm:$0xff]
        %v883 = vld [vmem:[#allocation2 + $0x25] sm:$0xff]
        %v884 = vld [vmem:[#allocation2 + $0x2d] sm:$0xff]
        %v885 = vld [vmem:[#allocation2 + $0x35] sm:$0xff]
        %v886 = vld [vmem:[#allocation2 + $0x3d] sm:$0xff]
        %v887 = vld [vmem:[%s3] sm:$0x1]
        %v888 = vperm.slane %v887, 0
        %v889 = vmul.f32 %v879, %v888
        %v890 = vmul.f32 %v880, %v888
        %v891 = vmul.f32 %v881, %v888
        %v892 = vmul.f32 %v882, %v888
        %v893 = vmul.f32 %v883, %v888
        %v894 = vmul.f32 %v884, %v888
        %v895 = vmul.f32 %v885, %v888
        %v896 = vmul.f32 %v886, %v888
        %v897 = vld [vmem:[#allocation2 + $0x6] sm:$0xff]
        %v898 = vld [vmem:[#allocation2 + $0xe] sm:$0xff]
        %v899 = vld [vmem:[#allocation2 + $0x16] sm:$0xff]
        %v900 = vld [vmem:[#allocation2 + $0x1e] sm:$0xff]
        %v901 = vld [vmem:[#allocation2 + $0x26] sm:$0xff]
        %v902 = vld [vmem:[#allocation2 + $0x2e] sm:$0xff]
        %v903 = vld [vmem:[#allocation2 + $0x36] sm:$0xff]
        %v904 = vld [vmem:[#allocation2 + $0x3e] sm:$0xff]
        %v905 = vld [vmem:[%s3 + $0x1] sm:$0x1]
        %v906 = vperm.slane %v905, 0
        %v907 = vmul.f32 %v897, %v906
        %v908 = vmul.f32 %v898, %v906
        %v909 = vmul.f32 %v899, %v906
        %v910 = vmul.f32 %v900, %v906
        %v911 = vmul.f32 %v901, %v906
        %v912 = vmul.f32 %v902, %v906
        %v913 = vmul.f32 %v903, %v906
        %v914 = vmul.f32 %v904, %v906
        %v915 = vadd.f32 %v889, %v907
        %v916 = vadd.f32 %v890, %v908
        %v917 = vadd.f32 %v891, %v909
        %v918 = vadd.f32 %v892, %v910
        %v919 = vadd.f32 %v893, %v911
        %v920 = vadd.f32 %v894, %v912
        %v921 = vadd.f32 %v895, %v913
        %v922 = vadd.f32 %v896, %v914
        %v923 = vld [vmem:[#allocation2 + $0x7] sm:$0xff]
        %v924 = vld [vmem:[#allocation2 + $0xf] sm:$0xff]
        %v925 = vld [vmem:[#allocation2 + $0x17] sm:$0xff]
        %v926 = vld [vmem:[#allocation2 + $0x1f] sm:$0xff]
        %v927 = vld [vmem:[#allocation2 + $0x27] sm:$0xff]
        %v928 = vld [vmem:[#allocation2 + $0x2f] sm:$0xff]
        %v929 = vld [vmem:[#allocation2 + $0x37] sm:$0xff]
        %v930 = vld [vmem:[#allocation2 + $0x3f] sm:$0xff]
        %v931 = vld [vmem:[%s3 + $0x2] sm:$0x1]
        %v932 = vperm.slane %v931, 0
        %v933 = vmul.f32 %v923, %v932
        %v934 = vmul.f32 %v924, %v932
        %v935 = vmul.f32 %v925, %v932
        %v936 = vmul.f32 %v926, %v932
        %v937 = vmul.f32 %v927, %v932
        %v938 = vmul.f32 %v928, %v932
        %v939 = vmul.f32 %v929, %v932
        %v940 = vmul.f32 %v930, %v932
        %v941 = vadd.f32 %v915, %v933
        %v942 = vadd.f32 %v916, %v934
        %v943 = vadd.f32 %v917, %v935
        %v944 = vadd.f32 %v918, %v936
        %v945 = vadd.f32 %v919, %v937
        %v946 = vadd.f32 %v920, %v938
        %v947 = vadd.f32 %v921, %v939
        %v948 = vadd.f32 %v922, %v940
        %v949 = vld [vmem:[#allocation2 + $0x8] sm:$0xff]
        %v950 = vld [vmem:[#allocation2 + $0x10] sm:$0xff]
        %v951 = vld [vmem:[#allocation2 + $0x18] sm:$0xff]
        %v952 = vld [vmem:[#allocation2 + $0x20] sm:$0xff]
        %v953 = vld [vmem:[#allocation2 + $0x28] sm:$0xff]
        %v954 = vld [vmem:[#allocation2 + $0x30] sm:$0xff]
        %v955 = vld [vmem:[#allocation2 + $0x38] sm:$0xff]
        %v956 = vld [vmem:[#allocation2 + $0x40] sm:$0xff]
        %v957 = vld [vmem:[%s3 + $0x3] sm:$0x1]
        %v958 = vperm.slane %v957, 0
        %v959 = vmul.f32 %v949, %v958
        %v960 = vmul.f32 %v950, %v958
        %v961 = vmul.f32 %v951, %v958
        %v962 = vmul.f32 %v952, %v958
        %v963 = vmul.f32 %v953, %v958
        %v964 = vmul.f32 %v954, %v958
        %v965 = vmul.f32 %v955, %v958
        %v966 = vmul.f32 %v956, %v958
        %v967 = vadd.f32 %v941, %v959
        %v968 = vadd.f32 %v942, %v960
        %v969 = vadd.f32 %v943, %v961
        %v970 = vadd.f32 %v944, %v962
        %v971 = vadd.f32 %v945, %v963
        %v972 = vadd.f32 %v946, %v964
        %v973 = vadd.f32 %v947, %v965
        %v974 = vadd.f32 %v948, %v966
        %v975 = vld [vmem:[#allocation2 + $0x9] sm:$0xff]
        %v976 = vld [vmem:[#allocation2 + $0x11] sm:$0xff]
        %v977 = vld [vmem:[#allocation2 + $0x19] sm:$0xff]
        %v978 = vld [vmem:[#allocation2 + $0x21] sm:$0xff]
        %v979 = vld [vmem:[#allocation2 + $0x29] sm:$0xff]
        %v980 = vld [vmem:[#allocation2 + $0x31] sm:$0xff]
        %v981 = vld [vmem:[#allocation2 + $0x39] sm:$0xff]
        %v982 = vld [vmem:[#allocation2 + $0x41] sm:$0xff]
        %v983 = vld [vmem:[%s3 + $0x4] sm:$0x1]
        %v984 = vperm.slane %v983, 0
        %v985 = vmul.f32 %v975, %v984
        %v986 = vmul.f32 %v976, %v984
        %v987 = vmul.f32 %v977, %v984
        %v988 = vmul.f32 %v978, %v984
        %v989 = vmul.f32 %v979, %v984
        %v990 = vmul.f32 %v980, %v984
        %v991 = vmul.f32 %v981, %v984
        %v992 = vmul.f32 %v982, %v984
        %v993 = vadd.f32 %v967, %v985
        %v994 = vadd.f32 %v968, %v986
        %v995 = vadd.f32 %v969, %v987
        %v996 = vadd.f32 %v970, %v988
        %v997 = vadd.f32 %v971, %v989
        %v998 = vadd.f32 %v972, %v990
        %v999 = vadd.f32 %v973, %v991
        %v1000 = vadd.f32 %v974, %v992
        %v1001 = vld [vmem:[#allocation2 + $0xa] sm:$0xff]
        %v1002 = vld [vmem:[#allocation2 + $0x12] sm:$0xff]
        %v1003 = vld [vmem:[#allocation2 + $0x1a] sm:$0xff]
        %v1004 = vld [vmem:[#allocation2 + $0x22] sm:$0xff]
        %v1005 = vld [vmem:[#allocation2 + $0x2a] sm:$0xff]
        %v1006 = vld [vmem:[#allocation2 + $0x32] sm:$0xff]
        %v1007 = vld [vmem:[#allocation2 + $0x3a] sm:$0xff]
        %v1008 = vld [vmem:[#allocation2 + $0x42] sm:$0xff]
        %v1009 = vld [vmem:[%s3 + $0x5] sm:$0x1]
        %v1010 = vperm.slane %v1009, 0
        %v1011 = vmul.f32 %v1001, %v1010
        %v1012 = vmul.f32 %v1002, %v1010
        %v1013 = vmul.f32 %v1003, %v1010
        %v1014 = vmul.f32 %v1004, %v1010
        %v1015 = vmul.f32 %v1005, %v1010
        %v1016 = vmul.f32 %v1006, %v1010
        %v1017 = vmul.f32 %v1007, %v1010
        %v1018 = vmul.f32 %v1008, %v1010
        %v1019 = vadd.f32 %v993, %v1011
        %v1020 = vadd.f32 %v994, %v1012
        %v1021 = vadd.f32 %v995, %v1013
        %v1022 = vadd.f32 %v996, %v1014
        %v1023 = vadd.f32 %v997, %v1015
        %v1024 = vadd.f32 %v998, %v1016
        %v1025 = vadd.f32 %v999, %v1017
        %v1026 = vadd.f32 %v1000, %v1018
        %v1027 = vld [vmem:[#allocation2 + $0xb] sm:$0xff]
        %v1028 = vld [vmem:[#allocation2 + $0x13] sm:$0xff]
        %v1029 = vld [vmem:[#allocation2 + $0x1b] sm:$0xff]
        %v1030 = vld [vmem:[#allocation2 + $0x23] sm:$0xff]
        %v1031 = vld [vmem:[#allocation2 + $0x2b] sm:$0xff]
        %v1032 = vld [vmem:[#allocation2 + $0x33] sm:$0xff]
        %v1033 = vld [vmem:[#allocation2 + $0x3b] sm:$0xff]
        %v1034 = vld [vmem:[#allocation2 + $0x43] sm:$0xff]
        %v1035 = vld [vmem:[%s3 + $0x6] sm:$0x1]
        %v1036 = vperm.slane %v1035, 0
        %v1037 = vmul.f32 %v1027, %v1036
        %v1038 = vmul.f32 %v1028, %v1036
        %v1039 = vmul.f32 %v1029, %v1036
        %v1040 = vmul.f32 %v1030, %v1036
        %v1041 = vmul.f32 %v1031, %v1036
        %v1042 = vmul.f32 %v1032, %v1036
        %v1043 = vmul.f32 %v1033, %v1036
        %v1044 = vmul.f32 %v1034, %v1036
        %v1045 = vadd.f32 %v1019, %v1037
        %v1046 = vadd.f32 %v1020, %v1038
        %v1047 = vadd.f32 %v1021, %v1039
        %v1048 = vadd.f32 %v1022, %v1040
        %v1049 = vadd.f32 %v1023, %v1041
        %v1050 = vadd.f32 %v1024, %v1042
        %v1051 = vadd.f32 %v1025, %v1043
        %v1052 = vadd.f32 %v1026, %v1044
        %v1053 = vperm.slane %v319, 0
        %v1054 = vadd.f32 %v1045, %v1053
        %v1055 = vadd.f32 %v1046, %v1053
        %v1056 = vadd.f32 %v1047, %v1053
        %v1057 = vadd.f32 %v1048, %v1053
        %v1058 = vadd.f32 %v1049, %v1053
        %v1059 = vadd.f32 %v1050, %v1053
        %v1060 = vadd.f32 %v1051, %v1053
        %v1061 = vadd.f32 %v1052, %v1053
        %v1062 = vmax.f32 %v1054, 0.0
        %v1063 = vmax.f32 %v1055, 0.0
        %v1064 = vmax.f32 %v1056, 0.0
        %v1065 = vmax.f32 %v1057, 0.0
        %v1066 = vmax.f32 %v1058, 0.0
        %v1067 = vmax.f32 %v1059, 0.0
        %v1068 = vmax.f32 %v1060, 0.0
        %v1069 = vmax.f32 %v1061, 0.0
        %s1070 = sld [smem:[#allocation3]]
        %v1071 = vstv %s1070
        %v1072 = vmul.f32 %v1062, %v1071
        %v1073 = vmul.f32 %v1063, %v1071
        %v1074 = vmul.f32 %v1064, %v1071
        %v1075 = vmul.f32 %v1065, %v1071
        %v1076 = vmul.f32 %v1066, %v1071
        %v1077 = vmul.f32 %v1067, %v1071
        %v1078 = vmul.f32 %v1068, %v1071
        %v1079 = vmul.f32 %v1069, %v1071
        %s1080 = sld [smem:[#allocation3 + $0x1]]
        %v1081 = vstv %s1080
        %v1082 = vadd.f32 %v1072, %v1081
        %v1083 = vadd.f32 %v1073, %v1081
        %v1084 = vadd.f32 %v1074, %v1081
        %v1085 = vadd.f32 %v1075, %v1081
        %v1086 = vadd.f32 %v1076, %v1081
        %v1087 = vadd.f32 %v1077, %v1081
        %v1088 = vadd.f32 %v1078, %v1081
        %v1089 = vadd.f32 %v1079, %v1081
        %1090 = vst [vmem:[%s312] sm:$0xff] %v1082
        %1091 = vst [vmem:[%s312 + $0x8] sm:$0xff] %v1083
        %1092 = vst [vmem:[%s312 + $0x10] sm:$0xff] %v1084
        %1093 = vst [vmem:[%s312 + $0x18] sm:$0xff] %v1085
        %1094 = vst [vmem:[%s312 + $0x20] sm:$0xff] %v1086
        %1095 = vst [vmem:[%s312 + $0x28] sm:$0xff] %v1087
        %1096 = vst [vmem:[%s312 + $0x30] sm:$0xff] %v1088
        %1097 = vst [vmem:[%s312 + $0x38] sm:$0xff] %v1089
        %s1098 = smul.u32 8, %s22
        %p1099 = scmp.lt.s32.totalorder %s21, 1
        %s1100 = scalar_select %p1099, %s21, 1
        %p1101 = scmp.lt.s32.totalorder %s1098, 31
        %s1102 = scalar_select %p1101, %s1098, 31
        %s1103 = smul.addr %s1100, 32
        %s1104 = sadd.s32 %s1102, %s1103
        %s1105 = smul.addr %s1104, 8
        %s1106 = scalar_lea.vmem %s5, %s1105
        // Predicated region
        $region49: #{conv_module_forward.1} parent=39 // pred_check
          %p1107 = pneg %p168
        $region50: #{conv_module_forward.1} parent=39 // pred_check_branch
          %1109 = sbr.rel (%p1107) target = $region52
        $region51: #{conv_module_forward.1} parent=39 // pred_region
          %s1110 = smul.u32 8, %s22
        $region52: #{conv_module_forward.1} parent=39 // pred_fallthru
          _
      $region40: #{conv_module_forward.1} parent=5 // pred_fallthru
        _
      %p1111 = scmp.le.s32.totalorder 2, %s12
      // Predicated region
      $region53: #{conv_module_forward.1} parent=5 // pred_check
        %p1112 = pneg %p1111
      $region54: #{conv_module_forward.1} parent=5 // pred_check_branch
        %1114 = sbr.rel (%p1112) target = $region56
      $region55: #{conv_module_forward.1} parent=5 // pred_region
        %s1115 = ssub.s32 %s12, 2
        // Predicated region
        $region57: #{conv_module_forward.1} parent=55 // pred_check
          %p1116 = pneg %p174
        $region58: #{conv_module_forward.1} parent=55 // pred_check_branch
          %1118 = sbr.rel (%p1116) target = $region60
        $region59: #{conv_module_forward.1} parent=55 // pred_region
          %s1119 = smul.u32 8, %s24
          %p1120 = scmp.lt.s32.totalorder %s23, 1
          %s1121 = scalar_select %p1120, %s23, 1
          %p1122 = scmp.lt.s32.totalorder %s1119, 31
          %s1123 = scalar_select %p1122, %s1119, 31
          %s1124 = smul.addr %s1121, 32
          %s1125 = sadd.s32 %s1123, %s1124
          %s1126 = smul.addr %s1125, 8
          %s1127 = scalar_lea.vmem %s5, %s1126
        $region60: #{conv_module_forward.1} parent=55 // pred_fallthru
          _
      $region56: #{conv_module_forward.1} parent=5 // pred_fallthru
        _
    $region6: #{conv_module_forward.1} parent=1 // loop_footer
      %s16 = sadd.s32 1, %s12
    $region7: #{conv_module_forward.1} parent=1 // loop_footer_branch
      %11 = sbr.rel target = $region3
    $region8: #{conv_module_forward.1} parent=1 // loop_exit
      _
    %1128 = vsyncpa [#allocation4], 1
    %s1129 = scalar_lea.sflag [#allocation4], 1
    %1130 = vsyncpa %s1129, 1

</llo_original>
